<compile_context>
chip_gen: v7x
topology: tpu7x:2x2x1
jax: 0.10.0
libtpu: 0.0.40
codegen_flags: <defaults>
</compile_context>

<pallas_src>
import jax
import jax.numpy as jnp
from jax.experimental import pallas as pl
from jax.experimental.pallas import tpu as pltpu

LN_EPS = 1e-5                      # torch nn.LayerNorm default
INV_SQRT2 = 0.7071067811865476


# ------------------------------ math helpers --------------------------------------

def _erf(x, *, approx_recip=False):
    # Abramowitz & Stegun 7.1.26 (|err| < 1.5e-7 in f32): matches torch's exact
    # erf-based GELU.  Only ops that lower cleanly in Mosaic; the exp (and, in
    # approx mode, the reciprocal) ride the EUP slot instead of the VALU.
    p = 0.3275911
    a1, a2, a3, a4, a5 = (0.254829592, -0.284496736, 1.421413741,
                          -1.453152027, 1.061405429)
    s = jnp.where(x >= 0, 1.0, -1.0).astype(x.dtype)
    ax = jnp.abs(x)
    den = 1.0 + p * ax
    if approx_recip:
        t = pl.reciprocal(den.astype(jnp.float32), approx=True).astype(x.dtype)
    else:
        t = 1.0 / den
    poly = ((((a5 * t + a4) * t + a3) * t + a2) * t + a1) * t
    return s * (1.0 - poly * jnp.exp(-ax * ax))


def _gelu(x, *, approx_recip=False):
    # torch nn.GELU() default (exact, erf-based)
    return 0.5 * x * (1.0 + _erf(x * INV_SQRT2, approx_recip=approx_recip))


def _layernorm(x, w, b):
    mu = jnp.mean(x, axis=-1, keepdims=True)
    var = jnp.mean((x - mu) ** 2, axis=-1, keepdims=True)
    return (x - mu) * jax.lax.rsqrt(var + LN_EPS) * w + b


def _pool_over_instances(v, n):
    """Per-bag sum over the n instances: (TB*n, F) -> (TB, F)."""
    m, f = v.shape
    tb = m // n
    if n % 8 == 0:
        # Layout-free: row groups line up with (8,128) sublane tiles, so the
        # reshape is a relabeling and the sum is an XLU sublane reduction
        # (frees the MXU from a K-padded selector matmul).
        return jnp.sum(v.reshape(tb, n, f), axis=1)
    # Fallback only for non-sublane-aligned n: selector matmul from 2-D iota.
    j = jax.lax.broadcasted_iota(jnp.int32, (tb, m), 1)
    i = jax.lax.broadcasted_iota(jnp.int32, (tb, m), 0)
    seg = jnp.where((j >= i * n) & (j < (i + 1) * n), 1.0, 0.0)
    return jnp.dot(seg, v, preferred_element_type=jnp.float32)


def _broadcast_to_instances(v, n):
    """Per-bag broadcast back over the n instances: (TB, F) -> (TB*n, F)."""
    tb, f = v.shape
    if n % 8 == 0:
        return jnp.broadcast_to(v[:, None, :], (tb, n, f)).reshape(tb * n, f)
    m = tb * n
    j = jax.lax.broadcasted_iota(jnp.int32, (m, tb), 0)
    i = jax.lax.broadcasted_iota(jnp.int32, (m, tb), 1)
    seg_t = jnp.where((j >= i * n) & (j < (i + 1) * n), 1.0, 0.0)
    return jnp.dot(seg_t, v, preferred_element_type=jnp.float32)


# ------------------------------ fused Pallas kernel --------------------------------

def fused_gmlp_kernel(x_ref,
                      ln1_w_ref, ln1_b_ref,
                      w_in_res_ref, w_in_gate_ref, b_in_res_ref, b_in_gate_ref,
                      ln2_w_ref, ln2_b_ref, sgu_w_ref, sgu_b_ref,
                      w_out_ref, b_out_ref,
                      hln_w_ref, hln_b_ref, w_cls_ref, b_cls_ref,
                      o_ref,
                      x_acc):
    """Grid = (batch_tiles, depth).  One gMLP layer per step; head on the last step."""
    d = pl.program_id(1)
    n_layers = pl.num_programs(1)
    TB, N, D = x_ref.shape
    M = TB * N

    mm_dtype = w_in_res_ref.dtype                          # bf16 (default) or f32
    bf16_mode = jnp.dtype(mm_dtype) == jnp.dtype(jnp.bfloat16)

    # Load the activation tile once per batch tile; residual stream stays f32.
    @pl.when(d == 0)
    def _():
        x_acc[...] = x_ref[...].reshape(M, D).astype(jnp.float32)

    x = x_acc[...]                                                     # (M, D) f32

    # ---- Residual(PreNorm(gMLPBlock)) for layer d --------------------------------
    y = _layernorm(x, ln1_w_ref[...], ln1_b_ref[...])
    yc = y.astype(mm_dtype)
    res_pre = (jnp.dot(yc, w_in_res_ref[...], preferred_element_type=jnp.float32)
               + b_in_res_ref[...])                                    # (M, F2) f32
    gate_pre = (jnp.dot(yc, w_in_gate_ref[...], preferred_element_type=jnp.float32)
                + b_in_gate_ref[...])                                  # (M, F2) f32
    # GELU evaluated in the matmul dtype (bf16 halves VALU cost on v6e/v7x; the
    # result feeds a bf16 matmul anyway).  f32 path keeps the exact polynomial.
    res = _gelu(res_pre.astype(mm_dtype), approx_recip=bf16_mode)      # (M, F2)
    gate = _gelu(gate_pre.astype(mm_dtype), approx_recip=bf16_mode)    # (M, F2)

    # SpatialGatingUnit (seq_len == 1, act == Identity):
    #   gate_out[b] = sgu_w * sum_n LN(gate[b, n]) + sgu_b, broadcast over n, * res
    g = _layernorm(gate.astype(jnp.float32), ln2_w_ref[...], ln2_b_ref[...])
    pooled = _pool_over_instances(g, N)                                # (TB, F2) f32
    gate_out = pooled * sgu_w_ref[...] + sgu_b_ref[...]                # (TB, F2)
    gate_rows = _broadcast_to_instances(gate_out, N)                   # (M, F2) f32
    sgu = gate_rows.astype(mm_dtype) * res                             # (M, F2)

    z = (jnp.dot(sgu, w_out_ref[...], preferred_element_type=jnp.float32)
         + b_out_ref[...])                                             # (M, D) f32
    x_acc[...] = x + z

    # ---- head fused into the last layer iteration --------------------------------
    @pl.when(d == n_layers - 1)
    def _():
        yh = _layernorm(x_acc[...], hln_w_ref[...], hln_b_ref[...])
        pooled_h = _pool_over_instances(yh, N) * (1.0 / N)             # (TB, D)
        logits = (jnp.dot(pooled_h, w_cls_ref[...],
                          preferred_element_type=jnp.float32) + b_cls_ref[...])
        o_ref[...] = logits.astype(o_ref.dtype)


# --------------------------------- wrapper ------------------------------------------

def _vmem_capacity_bytes():
    try:
        return int(pltpu.get_tpu_info().vmem_capacity_bytes)
    except Exception:
        return 64 << 20            # conservative: v7x per-core VMEM


def _vmem_need_bytes(TB, N, D, F2, C, wbytes, xbytes):
    """Explicit per-grid-step VMEM accounting (double-buffered streamed params and
    input tile, resident f32 residual scratch, and live (M,F2)/(M,D) temporaries)."""
    M = TB * N
    layer_w = (2 * D * F2 + F2 * D) * wbytes           # w_in_res, w_in_gate, w_out
    layer_v = (2 * D + 6 * F2 + D) * 4                 # LN / bias / sgu vectors (f32)
    weights = 2 * (layer_w + layer_v)                  # double-buffered by the pipeline
    x_in = 2 * M * D * xbytes                          # double-buffered x tile
    x_acc = M * D * 4                                  # f32 residual stream (scratch)
    temps = 3 * M * F2 * 4 + 2 * M * D * 4             # res/gate/g + y/z live values
    head_p = (2 * D + D * C + C) * 4
    out = 2 * TB * C * xbytes
    return weights + x_in + x_acc + temps + head_p + out


def _choose_batch_tile(B, N, D, F2, C, wbytes, xbytes, vmem_budget):
    """Largest batch tile whose per-step footprint fits the VMEM budget.

    A single tile (TB == B) is preferred: v5e/v6e have one TensorCore, so extra
    batch tiles only re-stream the whole per-layer weight stack and shrink MXU
    M-fill.  (On v7x, pass batch_tile=B//2 explicitly to feed both cores.)
    TB must divide B and be either B or a multiple of 8 so the (TB, C) logits
    block satisfies the sublane tiling constraint.
    """
    cands = [tb for tb in range(1, B + 1)
             if B % tb == 0 and (tb == B or tb % 8 == 0)]
    for tb in sorted(cands, reverse=True):
        if _vmem_need_bytes(tb, N, D, F2, C, wbytes, xbytes) <= vmem_budget:
            return tb
    return min(cands)


def gmlp_mil_pooling_forward(x, layers, head, num_classes, *,
                             batch_tile=None, matmul_dtype=jnp.bfloat16):
    """Returns (logits, None) like the PyTorch module (eval mode)."""
    B, N, D = x.shape
    depth = len(layers)
    F2 = layers[0]["w_in_res"].shape[1]

    mm_dtype = jnp.dtype(matmul_dtype)
    wbytes = mm_dtype.itemsize
    xbytes = jnp.dtype(x.dtype).itemsize

    vmem_cap = _vmem_capacity_bytes()
    if batch_tile is None:
        TB = _choose_batch_tile(B, N, D, F2, num_classes, wbytes, xbytes,
                                int(0.7 * vmem_cap))
    else:
        TB = batch_tile
    assert B % TB == 0 and (TB == B or TB % 8 == 0), (B, TB)
    num_bt = B // TB

    # Stack per-layer parameters along a leading depth axis (streamed per layer).
    # The three big matmul weights are cast to bf16 by default: halves weight DMA
    # and uses the fast MXU path; accumulation / residual stream stay f32.
    stacked = {k: jnp.stack([lp[k] for lp in layers], axis=0) for k in layers[0]}
    for k in ("w_in_res", "w_in_gate", "w_out"):
        stacked[k] = stacked[k].astype(mm_dtype)
    # TODO(synk): when F2 % 128 == 0, w_in_res / w_in_gate could be re-fused into
    # one (D, dim_ff) matmul with a lane-aligned slice of the result (minor win).

    def lspec(shape):   # per-layer param, streamed along the depth grid axis
        return pl.BlockSpec((None,) + shape, lambda bt, d: (d,) + (0,) * len(shape))

    def hspec(shape):   # head param, resident for the whole grid
        return pl.BlockSpec(shape, lambda bt, d: (0,) * len(shape))

    # Explicit scoped-VMEM limit from the accounting above (the default scoped
    # limit is 16/32 MiB on v5e/v6e, and v7x only has 64 MiB physical per core).
    need = _vmem_need_bytes(TB, N, D, F2, num_classes, wbytes, xbytes)
    vmem_limit = int(min(max(1.25 * need + (8 << 20), 32 << 20),
                         vmem_cap - (8 << 20)))

    grid_spec = pltpu.PrefetchScalarGridSpec(
        num_scalar_prefetch=0,
        grid=(num_bt, depth),        # batch tiles outer, depth (reduction-like) inner
        in_specs=[
            pl.BlockSpec((TB, N, D), lambda bt, d: (bt, 0, 0)),   # x: one fetch / tile
            lspec((1, D)), lspec((1, D)),                         # ln1 w/b
            lspec((D, F2)), lspec((D, F2)),                       # proj_in res/gate W
            lspec((1, F2)), lspec((1, F2)),                       # proj_in res/gate b
            lspec((1, F2)), lspec((1, F2)),                       # sgu LN w/b
            lspec((1, F2)), lspec((1, F2)),                       # sgu weight / bias
            lspec((F2, D)), lspec((1, D)),                        # proj_out w/b
            hspec((1, D)), hspec((1, D)),                         # head LN w/b
            hspec((D, num_classes)), hspec((1, num_classes)),     # head linear w/b
        ],
        out_specs=pl.BlockSpec((TB, num_classes), lambda bt, d: (bt, 0)),
        scratch_shapes=[pltpu.VMEM((TB * N, D), jnp.float32)],    # f32 residual stream
    )
    # NOTE: if the bf16 weight DMA is still exposed on v6e, bump the three weight
    # lspecs to pipeline_mode=pl.Buffered(3).  Do not do this on v7x (64 MiB VMEM).

    logits = pl.pallas_call(
        fused_gmlp_kernel,
        out_shape=jax.ShapeDtypeStruct((B, num_classes), x.dtype),
        grid_spec=grid_spec,
        compiler_params=pltpu.CompilerParams(
            dimension_semantics=("parallel", "arbitrary"),
            vmem_limit_bytes=vmem_limit),
    )(x,
      stacked["ln1_w"], stacked["ln1_b"],
      stacked["w_in_res"], stacked["w_in_gate"],
      stacked["b_in_res"], stacked["b_in_gate"],
      stacked["ln2_w"], stacked["ln2_b"], stacked["sgu_w"], stacked["sgu_b"],
      stacked["w_out"], stacked["b_out"],
      head["ln_w"], head["ln_b"], head["w_cls"], head["b_cls"])
    # TODO(synk): prob_survival / dropout_layers (training-only stochastic depth)
    # is not applied -- this is the eval-mode forward.
    return logits, None   # module returns (logits, None)


# --------------------------- deterministic parameters --------------------------------

def init_params(key, *, dim, depth, heads, ff_mult, num_classes, dtype=jnp.float32):
    dim_ff = dim * ff_mult
    f2 = dim_ff // 2
    d_head = f2 // heads
    layers = []
    for _ in range(depth):
        key, k0, k1, k2, k3, k4 = jax.random.split(key, 6)
        w_in = jax.random.normal(k0, (dim, dim_ff), dtype) / jnp.sqrt(float(dim))
        b_in = jax.random.normal(k1, (1, dim_ff), dtype) * 0.02
        sgu_head_w = jax.random.uniform(k4, (heads,), dtype, -1e-3, 1e-3)  # init_eps / dim_seq
        layers.append(dict(
            ln1_w=jnp.ones((1, dim), dtype), ln1_b=jnp.zeros((1, dim), dtype),
            w_in_res=w_in[:, :f2], w_in_gate=w_in[:, f2:],     # pre-split proj_in
            b_in_res=b_in[:, :f2], b_in_gate=b_in[:, f2:],
            ln2_w=jnp.ones((1, f2), dtype), ln2_b=jnp.zeros((1, f2), dtype),
            sgu_w=jnp.repeat(sgu_head_w, d_head)[None, :],     # per-channel scalar
            sgu_b=jnp.ones((1, f2), dtype),                    # torch.ones(heads, dim_seq)
            w_out=jax.random.normal(k2, (f2, dim), dtype) / jnp.sqrt(float(f2)),
            b_out=jax.random.normal(k3, (1, dim), dtype) * 0.02,
        ))
    key, k1, k2 = jax.random.split(key, 3)
    head = dict(
        ln_w=jnp.ones((1, dim), dtype), ln_b=jnp.zeros((1, dim), dtype),
        w_cls=jax.random.normal(k1, (dim, num_classes), dtype) / jnp.sqrt(float(dim)),
        b_cls=jax.random.normal(k2, (1, num_classes), dtype) * 0.02,
    )
    return layers, head


# ------------------------------- pure-JAX reference ----------------------------------

def _mm_hi(a, b):
    # full-precision f32 matmul on TPU for the reference
    return jnp.matmul(a, b, precision=jax.lax.Precision.HIGHEST)


def ref_forward(x, layers, head):
    x = x.astype(jnp.float32)
    for p in layers:
        y = _layernorm(x, p["ln1_w"], p["ln1_b"])
        res = _gelu(_mm_hi(y, p["w_in_res"]) + p["b_in_res"])
        gate = _gelu(_mm_hi(y, p["w_in_gate"]) + p["b_in_gate"])
        g = _layernorm(gate, p["ln2_w"], p["ln2_b"])
        pooled = jnp.sum(g, axis=1, keepdims=True)                  # (B, 1, F2)
        gate_out = pooled * p["sgu_w"] + p["sgu_b"]
        x = x + _mm_hi(gate_out * res, p["w_out"]) + p["b_out"]
    y = _layernorm(x, head["ln_w"], head["ln_b"])
    return _mm_hi(jnp.mean(y, axis=1), head["w_cls"]) + head["b_cls"]


if __name__ == "__main__":
    B, N, D = 2, 8, 32
    depth, heads, ff_mult, num_classes = 2, 1, 4, 3

    key = jax.random.PRNGKey(0)
    kx, kp = jax.random.split(key)
    x = jax.random.normal(kx, (B, N, D), jnp.float32)
    layers, head = init_params(kp, dim=D, depth=depth, heads=heads,
                               ff_mult=ff_mult, num_classes=num_classes)

    ref = ref_forward(x, layers, head)

    # Explicit f32 matmul path: strict check against the pure-JAX reference.
    logits_f32, aux = gmlp_mil_pooling_forward(x, layers, head, num_classes,
                                               matmul_dtype=jnp.float32)
    logits_f32 = jax.block_until_ready(logits_f32)
    assert aux is None
    assert logits_f32.shape == (B, num_classes)
    assert jnp.allclose(logits_f32, ref, rtol=2e-4, atol=2e-4), (logits_f32, ref)

    # Default path: bf16 matmul operands + bf16 GELU, f32 accumulation: loose check.
    logits_bf16, _ = gmlp_mil_pooling_forward(x, layers, head, num_classes)
    logits_bf16 = jax.block_until_ready(logits_bf16)
    assert logits_bf16.shape == (B, num_classes)
    assert jnp.allclose(logits_bf16, ref, rtol=1e-1, atol=1e-1), (logits_bf16, ref)

    print("KERNEL_OK")
</pallas_src>

<mosaic_0001>
module attributes {stable_mosaic.version = 11 : i64} {
  func.func @fused_gmlp_kernel(%arg0: i32, %arg1: i32, %arg2: memref<2x8x32xf32, #tpu.memory_space<vmem>>, %arg3: memref<1x1x32xf32, #tpu.memory_space<vmem>>, %arg4: memref<1x1x32xf32, #tpu.memory_space<vmem>>, %arg5: memref<1x32x64xf32, #tpu.memory_space<vmem>>, %arg6: memref<1x32x64xf32, #tpu.memory_space<vmem>>, %arg7: memref<1x1x64xf32, #tpu.memory_space<vmem>>, %arg8: memref<1x1x64xf32, #tpu.memory_space<vmem>>, %arg9: memref<1x1x64xf32, #tpu.memory_space<vmem>>, %arg10: memref<1x1x64xf32, #tpu.memory_space<vmem>>, %arg11: memref<1x1x64xf32, #tpu.memory_space<vmem>>, %arg12: memref<1x1x64xf32, #tpu.memory_space<vmem>>, %arg13: memref<1x64x32xf32, #tpu.memory_space<vmem>>, %arg14: memref<1x1x32xf32, #tpu.memory_space<vmem>>, %arg15: memref<1x32xf32, #tpu.memory_space<vmem>>, %arg16: memref<1x32xf32, #tpu.memory_space<vmem>>, %arg17: memref<32x3xf32, #tpu.memory_space<vmem>>, %arg18: memref<1x3xf32, #tpu.memory_space<vmem>>, %arg19: memref<2x3xf32, #tpu.memory_space<vmem>>, %arg20: memref<16x32xf32, #tpu.memory_space<vmem>>) attributes {dimension_semantics = [#tpu.dimension_semantics<parallel>, #tpu.dimension_semantics<arbitrary>], iteration_bounds = array<i64: 1, 2>, scalar_prefetch = 0 : i64, scratch_operands = 1 : i64, tpu.core_type = #tpu.core_type<tc>, window_params = [{transform_indices = @transform_0, window_bounds = array<i64: 2, 8, 32>}, {transform_indices = @transform_1, window_bounds = array<i64: 1, 1, 32>}, {transform_indices = @transform_2, window_bounds = array<i64: 1, 1, 32>}, {transform_indices = @transform_3, window_bounds = array<i64: 1, 32, 64>}, {transform_indices = @transform_4, window_bounds = array<i64: 1, 32, 64>}, {transform_indices = @transform_5, window_bounds = array<i64: 1, 1, 64>}, {transform_indices = @transform_6, window_bounds = array<i64: 1, 1, 64>}, {transform_indices = @transform_7, window_bounds = array<i64: 1, 1, 64>}, {transform_indices = @transform_8, window_bounds = array<i64: 1, 1, 64>}, {transform_indices = @transform_9, window_bounds = array<i64: 1, 1, 64>}, {transform_indices = @transform_10, window_bounds = array<i64: 1, 1, 64>}, {transform_indices = @transform_11, window_bounds = array<i64: 1, 64, 32>}, {transform_indices = @transform_12, window_bounds = array<i64: 1, 1, 32>}, {pipeline_mode = #tpu.pipeline_mode<synchronous>, transform_indices = @transform_13, window_bounds = array<i64: 1, 32>}, {pipeline_mode = #tpu.pipeline_mode<synchronous>, transform_indices = @transform_14, window_bounds = array<i64: 1, 32>}, {pipeline_mode = #tpu.pipeline_mode<synchronous>, transform_indices = @transform_15, window_bounds = array<i64: 32, 3>}, {pipeline_mode = #tpu.pipeline_mode<synchronous>, transform_indices = @transform_16, window_bounds = array<i64: 1, 3>}, {transform_indices = @transform_17, window_bounds = array<i64: 2, 3>}]} {
    %c0_i32 = arith.constant 0 : i32
    %0 = arith.cmpi eq, %arg1, %c0_i32 : i32
    %1 = arith.extui %0 : i1 to i32
    %c0_i32_0 = arith.constant 0 : i32
    %2 = arith.cmpi ne, %1, %c0_i32_0 : i32
    scf.if %2 {
      %c0_86 = arith.constant 0 : index
      %c0_87 = arith.constant 0 : index
      %c0_88 = arith.constant 0 : index
      %179 = vector.load %arg2[%c0_86, %c0_87, %c0_88] : memref<2x8x32xf32, #tpu.memory_space<vmem>>, vector<2x8x32xf32>
      %180 = vector.shape_cast %179 : vector<2x8x32xf32> to vector<16x32xf32>
      %c0_89 = arith.constant 0 : index
      %c0_90 = arith.constant 0 : index
      %181 = vector.load %arg20[%c0_89, %c0_90] : memref<16x32xf32, #tpu.memory_space<vmem>>, vector<16x32xf32>
      tpu.vector_store %arg20[%c0_89, %c0_90], %180 {strides = array<i32>} : memref<16x32xf32, #tpu.memory_space<vmem>>, vector<16x32xf32>,
    } else {
    }
    %c0 = arith.constant 0 : index
    %c0_1 = arith.constant 0 : index
    %3 = vector.load %arg20[%c0, %c0_1] : memref<16x32xf32, #tpu.memory_space<vmem>>, vector<16x32xf32>
    %c0_2 = arith.constant 0 : index
    %c0_3 = arith.constant 0 : index
    %c0_4 = arith.constant 0 : index
    %4 = vector.load %arg3[%c0_2, %c0_3, %c0_4] : memref<1x1x32xf32, #tpu.memory_space<vmem>>, vector<1x1x32xf32>
    %5 = vector.shape_cast %4 : vector<1x1x32xf32> to vector<1x32xf32>
    %c0_5 = arith.constant 0 : index
    %c0_6 = arith.constant 0 : index
    %c0_7 = arith.constant 0 : index
    %6 = vector.load %arg4[%c0_5, %c0_6, %c0_7] : memref<1x1x32xf32, #tpu.memory_space<vmem>>, vector<1x1x32xf32>
    %7 = vector.shape_cast %6 : vector<1x1x32xf32> to vector<1x32xf32>
    %cst = arith.constant dense<0.000000e+00> : vector<16xf32>
    %8 = vector.multi_reduction <add>, %3, %cst [1] : vector<16x32xf32> to vector<16xf32>
    %9 = vector.shape_cast %8 : vector<16xf32> to vector<16x1xf32>
    %cst_8 = arith.constant 3.200000e+01 : f32
    %10 = vector.broadcast %cst_8 : f32 to vector<16x1xf32>
    %11 = arith.divf %9, %10 : vector<16x1xf32>
    %12 = vector.broadcast %11 : vector<16x1xf32> to vector<16x32xf32>
    %13 = arith.subf %3, %12 : vector<16x32xf32>
    %14 = arith.mulf %13, %13 : vector<16x32xf32>
    %cst_9 = arith.constant dense<0.000000e+00> : vector<16xf32>
    %15 = vector.multi_reduction <add>, %14, %cst_9 [1] : vector<16x32xf32> to vector<16xf32>
    %16 = vector.shape_cast %15 : vector<16xf32> to vector<16x1xf32>
    %cst_10 = arith.constant 3.200000e+01 : f32
    %17 = vector.broadcast %cst_10 : f32 to vector<16x1xf32>
    %18 = arith.divf %16, %17 : vector<16x1xf32>
    %19 = vector.broadcast %11 : vector<16x1xf32> to vector<16x32xf32>
    %20 = arith.subf %3, %19 : vector<16x32xf32>
    %cst_11 = arith.constant 9.99999974E-6 : f32
    %21 = vector.broadcast %cst_11 : f32 to vector<16x1xf32>
    %22 = arith.addf %18, %21 : vector<16x1xf32>
    %23 = math.rsqrt %22 : vector<16x1xf32>
    %24 = vector.broadcast %23 : vector<16x1xf32> to vector<16x32xf32>
    %25 = arith.mulf %20, %24 : vector<16x32xf32>
    %26 = vector.broadcast %5 : vector<1x32xf32> to vector<16x32xf32>
    %27 = arith.mulf %25, %26 : vector<16x32xf32>
    %28 = vector.broadcast %7 : vector<1x32xf32> to vector<16x32xf32>
    %29 = arith.addf %27, %28 : vector<16x32xf32>
    %c0_12 = arith.constant 0 : index
    %c0_13 = arith.constant 0 : index
    %c0_14 = arith.constant 0 : index
    %30 = vector.load %arg5[%c0_12, %c0_13, %c0_14] : memref<1x32x64xf32, #tpu.memory_space<vmem>>, vector<1x32x64xf32>
    %31 = vector.shape_cast %30 : vector<1x32x64xf32> to vector<32x64xf32>
    %cst_15 = arith.constant dense<0.000000e+00> : vector<16x64xf32>
    %32 = tpu.matmul %29, %31, %cst_15 {dimension_numbers = #tpu.dot_dimension_numbers<[1], [0], [0], [1], [0, 0, 1, 1], [], []>} : vector<16x32xf32>, vector<32x64xf32>, vector<16x64xf32> -> vector<16x64xf32>
    %c0_16 = arith.constant 0 : index
    %c0_17 = arith.constant 0 : index
    %c0_18 = arith.constant 0 : index
    %33 = vector.load %arg7[%c0_16, %c0_17, %c0_18] : memref<1x1x64xf32, #tpu.memory_space<vmem>>, vector<1x1x64xf32>
    %34 = vector.shape_cast %33 : vector<1x1x64xf32> to vector<1x64xf32>
    %35 = vector.broadcast %34 : vector<1x64xf32> to vector<16x64xf32>
    %36 = arith.addf %32, %35 : vector<16x64xf32>
    %c0_19 = arith.constant 0 : index
    %c0_20 = arith.constant 0 : index
    %c0_21 = arith.constant 0 : index
    %37 = vector.load %arg6[%c0_19, %c0_20, %c0_21] : memref<1x32x64xf32, #tpu.memory_space<vmem>>, vector<1x32x64xf32>
    %38 = vector.shape_cast %37 : vector<1x32x64xf32> to vector<32x64xf32>
    %cst_22 = arith.constant dense<0.000000e+00> : vector<16x64xf32>
    %39 = tpu.matmul %29, %38, %cst_22 {dimension_numbers = #tpu.dot_dimension_numbers<[1], [0], [0], [1], [0, 0, 1, 1], [], []>} : vector<16x32xf32>, vector<32x64xf32>, vector<16x64xf32> -> vector<16x64xf32>
    %c0_23 = arith.constant 0 : index
    %c0_24 = arith.constant 0 : index
    %c0_25 = arith.constant 0 : index
    %40 = vector.load %arg8[%c0_23, %c0_24, %c0_25] : memref<1x1x64xf32, #tpu.memory_space<vmem>>, vector<1x1x64xf32>
    %41 = vector.shape_cast %40 : vector<1x1x64xf32> to vector<1x64xf32>
    %42 = vector.broadcast %41 : vector<1x64xf32> to vector<16x64xf32>
    %43 = arith.addf %39, %42 : vector<16x64xf32>
    %cst_26 = arith.constant 5.000000e-01 : f32
    %44 = vector.broadcast %cst_26 : f32 to vector<16x64xf32>
    %45 = arith.mulf %44, %36 : vector<16x64xf32>
    %cst_27 = arith.constant 0.707106769 : f32
    %46 = vector.broadcast %cst_27 : f32 to vector<16x64xf32>
    %47 = arith.mulf %36, %46 : vector<16x64xf32>
    %cst_28 = arith.constant 0.000000e+00 : f32
    %48 = vector.broadcast %cst_28 : f32 to vector<16x64xf32>
    %49 = arith.cmpf oge, %47, %48 : vector<16x64xf32>
    %cst_29 = arith.constant 1.000000e+00 : f32
    %cst_30 = arith.constant -1.000000e+00 : f32
    %50 = vector.broadcast %cst_29 : f32 to vector<16x64xf32>
    %51 = vector.broadcast %cst_30 : f32 to vector<16x64xf32>
    %52 = arith.select %49, %50, %51 : vector<16x64xi1>, vector<16x64xf32>
    %53 = math.absf %47 : vector<16x64xf32>
    %cst_31 = arith.constant 0.327591091 : f32
    %54 = vector.broadcast %cst_31 : f32 to vector<16x64xf32>
    %55 = arith.mulf %54, %53 : vector<16x64xf32>
    %cst_32 = arith.constant 1.000000e+00 : f32
    %56 = vector.broadcast %cst_32 : f32 to vector<16x64xf32>
    %57 = arith.addf %56, %55 : vector<16x64xf32>
    %cst_33 = arith.constant 1.000000e+00 : f32
    %58 = vector.broadcast %cst_33 : f32 to vector<16x64xf32>
    %59 = arith.divf %58, %57 : vector<16x64xf32>
    %cst_34 = arith.constant 1.06140542 : f32
    %60 = vector.broadcast %cst_34 : f32 to vector<16x64xf32>
    %61 = arith.mulf %60, %59 : vector<16x64xf32>
    %cst_35 = arith.constant -1.45315206 : f32
    %62 = vector.broadcast %cst_35 : f32 to vector<16x64xf32>
    %63 = arith.addf %61, %62 : vector<16x64xf32>
    %64 = arith.mulf %63, %59 : vector<16x64xf32>
    %cst_36 = arith.constant 1.42141378 : f32
    %65 = vector.broadcast %cst_36 : f32 to vector<16x64xf32>
    %66 = arith.addf %64, %65 : vector<16x64xf32>
    %67 = arith.mulf %66, %59 : vector<16x64xf32>
    %cst_37 = arith.constant -0.284496725 : f32
    %68 = vector.broadcast %cst_37 : f32 to vector<16x64xf32>
    %69 = arith.addf %67, %68 : vector<16x64xf32>
    %70 = arith.mulf %69, %59 : vector<16x64xf32>
    %cst_38 = arith.constant 0.254829586 : f32
    %71 = vector.broadcast %cst_38 : f32 to vector<16x64xf32>
    %72 = arith.addf %70, %71 : vector<16x64xf32>
    %73 = arith.mulf %72, %59 : vector<16x64xf32>
    %cst_39 = arith.constant 0.000000e+00 : f32
    %74 = vector.broadcast %cst_39 : f32 to vector<16x64xf32>
    %75 = arith.subf %74, %53 : vector<16x64xf32>
    %76 = arith.mulf %75, %53 : vector<16x64xf32>
    %77 = math.exp %76 : vector<16x64xf32>
    %78 = arith.mulf %73, %77 : vector<16x64xf32>
    %cst_40 = arith.constant 1.000000e+00 : f32
    %79 = vector.broadcast %cst_40 : f32 to vector<16x64xf32>
    %80 = arith.subf %79, %78 : vector<16x64xf32>
    %81 = arith.mulf %52, %80 : vector<16x64xf32>
    %cst_41 = arith.constant 1.000000e+00 : f32
    %82 = vector.broadcast %cst_41 : f32 to vector<16x64xf32>
    %83 = arith.addf %82, %81 : vector<16x64xf32>
    %84 = arith.mulf %45, %83 : vector<16x64xf32>
    %cst_42 = arith.constant 5.000000e-01 : f32
    %85 = vector.broadcast %cst_42 : f32 to vector<16x64xf32>
    %86 = arith.mulf %85, %43 : vector<16x64xf32>
    %cst_43 = arith.constant 0.707106769 : f32
    %87 = vector.broadcast %cst_43 : f32 to vector<16x64xf32>
    %88 = arith.mulf %43, %87 : vector<16x64xf32>
    %cst_44 = arith.constant 0.000000e+00 : f32
    %89 = vector.broadcast %cst_44 : f32 to vector<16x64xf32>
    %90 = arith.cmpf oge, %88, %89 : vector<16x64xf32>
    %cst_45 = arith.constant 1.000000e+00 : f32
    %cst_46 = arith.constant -1.000000e+00 : f32
    %91 = vector.broadcast %cst_45 : f32 to vector<16x64xf32>
    %92 = vector.broadcast %cst_46 : f32 to vector<16x64xf32>
    %93 = arith.select %90, %91, %92 : vector<16x64xi1>, vector<16x64xf32>
    %94 = math.absf %88 : vector<16x64xf32>
    %cst_47 = arith.constant 0.327591091 : f32
    %95 = vector.broadcast %cst_47 : f32 to vector<16x64xf32>
    %96 = arith.mulf %95, %94 : vector<16x64xf32>
    %cst_48 = arith.constant 1.000000e+00 : f32
    %97 = vector.broadcast %cst_48 : f32 to vector<16x64xf32>
    %98 = arith.addf %97, %96 : vector<16x64xf32>
    %cst_49 = arith.constant 1.000000e+00 : f32
    %99 = vector.broadcast %cst_49 : f32 to vector<16x64xf32>
    %100 = arith.divf %99, %98 : vector<16x64xf32>
    %cst_50 = arith.constant 1.06140542 : f32
    %101 = vector.broadcast %cst_50 : f32 to vector<16x64xf32>
    %102 = arith.mulf %101, %100 : vector<16x64xf32>
    %cst_51 = arith.constant -1.45315206 : f32
    %103 = vector.broadcast %cst_51 : f32 to vector<16x64xf32>
    %104 = arith.addf %102, %103 : vector<16x64xf32>
    %105 = arith.mulf %104, %100 : vector<16x64xf32>
    %cst_52 = arith.constant 1.42141378 : f32
    %106 = vector.broadcast %cst_52 : f32 to vector<16x64xf32>
    %107 = arith.addf %105, %106 : vector<16x64xf32>
    %108 = arith.mulf %107, %100 : vector<16x64xf32>
    %cst_53 = arith.constant -0.284496725 : f32
    %109 = vector.broadcast %cst_53 : f32 to vector<16x64xf32>
    %110 = arith.addf %108, %109 : vector<16x64xf32>
    %111 = arith.mulf %110, %100 : vector<16x64xf32>
    %cst_54 = arith.constant 0.254829586 : f32
    %112 = vector.broadcast %cst_54 : f32 to vector<16x64xf32>
    %113 = arith.addf %111, %112 : vector<16x64xf32>
    %114 = arith.mulf %113, %100 : vector<16x64xf32>
    %cst_55 = arith.constant 0.000000e+00 : f32
    %115 = vector.broadcast %cst_55 : f32 to vector<16x64xf32>
    %116 = arith.subf %115, %94 : vector<16x64xf32>
    %117 = arith.mulf %116, %94 : vector<16x64xf32>
    %118 = math.exp %117 : vector<16x64xf32>
    %119 = arith.mulf %114, %118 : vector<16x64xf32>
    %cst_56 = arith.constant 1.000000e+00 : f32
    %120 = vector.broadcast %cst_56 : f32 to vector<16x64xf32>
    %121 = arith.subf %120, %119 : vector<16x64xf32>
    %122 = arith.mulf %93, %121 : vector<16x64xf32>
    %cst_57 = arith.constant 1.000000e+00 : f32
    %123 = vector.broadcast %cst_57 : f32 to vector<16x64xf32>
    %124 = arith.addf %123, %122 : vector<16x64xf32>
    %125 = arith.mulf %86, %124 : vector<16x64xf32>
    %c0_58 = arith.constant 0 : index
    %c0_59 = arith.constant 0 : index
    %c0_60 = arith.constant 0 : index
    %126 = vector.load %arg9[%c0_58, %c0_59, %c0_60] : memref<1x1x64xf32, #tpu.memory_space<vmem>>, vector<1x1x64xf32>
    %127 = vector.shape_cast %126 : vector<1x1x64xf32> to vector<1x64xf32>
    %c0_61 = arith.constant 0 : index
    %c0_62 = arith.constant 0 : index
    %c0_63 = arith.constant 0 : index
    %128 = vector.load %arg10[%c0_61, %c0_62, %c0_63] : memref<1x1x64xf32, #tpu.memory_space<vmem>>, vector<1x1x64xf32>
    %129 = vector.shape_cast %128 : vector<1x1x64xf32> to vector<1x64xf32>
    %cst_64 = arith.constant dense<0.000000e+00> : vector<16xf32>
    %130 = vector.multi_reduction <add>, %125, %cst_64 [1] : vector<16x64xf32> to vector<16xf32>
    %131 = vector.shape_cast %130 : vector<16xf32> to vector<16x1xf32>
    %cst_65 = arith.constant 6.400000e+01 : f32
    %132 = vector.broadcast %cst_65 : f32 to vector<16x1xf32>
    %133 = arith.divf %131, %132 : vector<16x1xf32>
    %134 = vector.broadcast %133 : vector<16x1xf32> to vector<16x64xf32>
    %135 = arith.subf %125, %134 : vector<16x64xf32>
    %136 = arith.mulf %135, %135 : vector<16x64xf32>
    %cst_66 = arith.constant dense<0.000000e+00> : vector<16xf32>
    %137 = vector.multi_reduction <add>, %136, %cst_66 [1] : vector<16x64xf32> to vector<16xf32>
    %138 = vector.shape_cast %137 : vector<16xf32> to vector<16x1xf32>
    %cst_67 = arith.constant 6.400000e+01 : f32
    %139 = vector.broadcast %cst_67 : f32 to vector<16x1xf32>
    %140 = arith.divf %138, %139 : vector<16x1xf32>
    %141 = vector.broadcast %133 : vector<16x1xf32> to vector<16x64xf32>
    %142 = arith.subf %125, %141 : vector<16x64xf32>
    %cst_68 = arith.constant 9.99999974E-6 : f32
    %143 = vector.broadcast %cst_68 : f32 to vector<16x1xf32>
    %144 = arith.addf %140, %143 : vector<16x1xf32>
    %145 = math.rsqrt %144 : vector<16x1xf32>
    %146 = vector.broadcast %145 : vector<16x1xf32> to vector<16x64xf32>
    %147 = arith.mulf %142, %146 : vector<16x64xf32>
    %148 = vector.broadcast %127 : vector<1x64xf32> to vector<16x64xf32>
    %149 = arith.mulf %147, %148 : vector<16x64xf32>
    %150 = vector.broadcast %129 : vector<1x64xf32> to vector<16x64xf32>
    %151 = arith.addf %149, %150 : vector<16x64xf32>
    %152 = vector.shape_cast %151 : vector<16x64xf32> to vector<2x8x64xf32>
    %cst_69 = arith.constant dense<0.000000e+00> : vector<2x64xf32>
    %153 = vector.multi_reduction <add>, %152, %cst_69 [1] : vector<2x8x64xf32> to vector<2x64xf32>
    %c0_70 = arith.constant 0 : index
    %c0_71 = arith.constant 0 : index
    %c0_72 = arith.constant 0 : index
    %154 = vector.load %arg11[%c0_70, %c0_71, %c0_72] : memref<1x1x64xf32, #tpu.memory_space<vmem>>, vector<1x1x64xf32>
    %155 = vector.shape_cast %154 : vector<1x1x64xf32> to vector<1x64xf32>
    %156 = vector.broadcast %155 : vector<1x64xf32> to vector<2x64xf32>
    %157 = arith.mulf %153, %156 : vector<2x64xf32>
    %c0_73 = arith.constant 0 : index
    %c0_74 = arith.constant 0 : index
    %c0_75 = arith.constant 0 : index
    %158 = vector.load %arg12[%c0_73, %c0_74, %c0_75] : memref<1x1x64xf32, #tpu.memory_space<vmem>>, vector<1x1x64xf32>
    %159 = vector.shape_cast %158 : vector<1x1x64xf32> to vector<1x64xf32>
    %160 = vector.broadcast %159 : vector<1x64xf32> to vector<2x64xf32>
    %161 = arith.addf %157, %160 : vector<2x64xf32>
    %162 = vector.shape_cast %161 : vector<2x64xf32> to vector<2x1x64xf32>
    %163 = vector.shape_cast %162 : vector<2x1x64xf32> to vector<2x1x64xf32>
    %164 = vector.broadcast %163 : vector<2x1x64xf32> to vector<2x8x64xf32>
    %165 = vector.shape_cast %164 : vector<2x8x64xf32> to vector<16x64xf32>
    %166 = arith.mulf %165, %84 : vector<16x64xf32>
    %c0_76 = arith.constant 0 : index
    %c0_77 = arith.constant 0 : index
    %c0_78 = arith.constant 0 : index
    %167 = vector.load %arg13[%c0_76, %c0_77, %c0_78] : memref<1x64x32xf32, #tpu.memory_space<vmem>>, vector<1x64x32xf32>
    %168 = vector.shape_cast %167 : vector<1x64x32xf32> to vector<64x32xf32>
    %cst_79 = arith.constant dense<0.000000e+00> : vector<16x32xf32>
    %169 = tpu.matmul %166, %168, %cst_79 {dimension_numbers = #tpu.dot_dimension_numbers<[1], [0], [0], [1], [0, 0, 1, 1], [], []>} : vector<16x64xf32>, vector<64x32xf32>, vector<16x32xf32> -> vector<16x32xf32>
    %c0_80 = arith.constant 0 : index
    %c0_81 = arith.constant 0 : index
    %c0_82 = arith.constant 0 : index
    %170 = vector.load %arg14[%c0_80, %c0_81, %c0_82] : memref<1x1x32xf32, #tpu.memory_space<vmem>>, vector<1x1x32xf32>
    %171 = vector.shape_cast %170 : vector<1x1x32xf32> to vector<1x32xf32>
    %172 = vector.broadcast %171 : vector<1x32xf32> to vector<16x32xf32>
    %173 = arith.addf %169, %172 : vector<16x32xf32>
    %174 = arith.addf %3, %173 : vector<16x32xf32>
    %c0_83 = arith.constant 0 : index
    %c0_84 = arith.constant 0 : index
    %175 = vector.load %arg20[%c0_83, %c0_84] : memref<16x32xf32, #tpu.memory_space<vmem>>, vector<16x32xf32>
    tpu.vector_store %arg20[%c0_83, %c0_84], %174 {strides = array<i32>} : memref<16x32xf32, #tpu.memory_space<vmem>>, vector<16x32xf32>,
    %c1_i32 = arith.constant 1 : i32
    %176 = arith.cmpi eq, %arg1, %c1_i32 : i32
    %177 = arith.extui %176 : i1 to i32
    %c0_i32_85 = arith.constant 0 : i32
    %178 = arith.cmpi ne, %177, %c0_i32_85 : i32
    scf.if %178 {
      %c0_86 = arith.constant 0 : index
      %c0_87 = arith.constant 0 : index
      %179 = vector.load %arg20[%c0_86, %c0_87] : memref<16x32xf32, #tpu.memory_space<vmem>>, vector<16x32xf32>
      %c0_88 = arith.constant 0 : index
      %c0_89 = arith.constant 0 : index
      %180 = vector.load %arg15[%c0_88, %c0_89] : memref<1x32xf32, #tpu.memory_space<vmem>>, vector<1x32xf32>
      %c0_90 = arith.constant 0 : index
      %c0_91 = arith.constant 0 : index
      %181 = vector.load %arg16[%c0_90, %c0_91] : memref<1x32xf32, #tpu.memory_space<vmem>>, vector<1x32xf32>
      %cst_92 = arith.constant dense<0.000000e+00> : vector<16xf32>
      %182 = vector.multi_reduction <add>, %179, %cst_92 [1] : vector<16x32xf32> to vector<16xf32>
      %183 = vector.shape_cast %182 : vector<16xf32> to vector<16x1xf32>
      %cst_93 = arith.constant 3.200000e+01 : f32
      %184 = vector.broadcast %cst_93 : f32 to vector<16x1xf32>
      %185 = arith.divf %183, %184 : vector<16x1xf32>
      %186 = vector.broadcast %185 : vector<16x1xf32> to vector<16x32xf32>
      %187 = arith.subf %179, %186 : vector<16x32xf32>
      %188 = arith.mulf %187, %187 : vector<16x32xf32>
      %cst_94 = arith.constant dense<0.000000e+00> : vector<16xf32>
      %189 = vector.multi_reduction <add>, %188, %cst_94 [1] : vector<16x32xf32> to vector<16xf32>
      %190 = vector.shape_cast %189 : vector<16xf32> to vector<16x1xf32>
      %cst_95 = arith.constant 3.200000e+01 : f32
      %191 = vector.broadcast %cst_95 : f32 to vector<16x1xf32>
      %192 = arith.divf %190, %191 : vector<16x1xf32>
      %193 = vector.broadcast %185 : vector<16x1xf32> to vector<16x32xf32>
      %194 = arith.subf %179, %193 : vector<16x32xf32>
      %cst_96 = arith.constant 9.99999974E-6 : f32
      %195 = vector.broadcast %cst_96 : f32 to vector<16x1xf32>
      %196 = arith.addf %192, %195 : vector<16x1xf32>
      %197 = math.rsqrt %196 : vector<16x1xf32>
      %198 = vector.broadcast %197 : vector<16x1xf32> to vector<16x32xf32>
      %199 = arith.mulf %194, %198 : vector<16x32xf32>
      %200 = vector.broadcast %180 : vector<1x32xf32> to vector<16x32xf32>
      %201 = arith.mulf %199, %200 : vector<16x32xf32>
      %202 = vector.broadcast %181 : vector<1x32xf32> to vector<16x32xf32>
      %203 = arith.addf %201, %202 : vector<16x32xf32>
      %204 = vector.shape_cast %203 : vector<16x32xf32> to vector<2x8x32xf32>
      %cst_97 = arith.constant dense<0.000000e+00> : vector<2x32xf32>
      %205 = vector.multi_reduction <add>, %204, %cst_97 [1] : vector<2x8x32xf32> to vector<2x32xf32>
      %cst_98 = arith.constant 1.250000e-01 : f32
      %206 = vector.broadcast %cst_98 : f32 to vector<2x32xf32>
      %207 = arith.mulf %205, %206 : vector<2x32xf32>
      %c0_99 = arith.constant 0 : index
      %c0_100 = arith.constant 0 : index
      %208 = vector.load %arg17[%c0_99, %c0_100] : memref<32x3xf32, #tpu.memory_space<vmem>>, vector<32x3xf32>
      %cst_101 = arith.constant dense<0.000000e+00> : vector<2x3xf32>
      %209 = tpu.matmul %207, %208, %cst_101 {dimension_numbers = #tpu.dot_dimension_numbers<[1], [0], [0], [1], [0, 0, 1, 1], [], []>} : vector<2x32xf32>, vector<32x3xf32>, vector<2x3xf32> -> vector<2x3xf32>
      %c0_102 = arith.constant 0 : index
      %c0_103 = arith.constant 0 : index
      %210 = vector.load %arg18[%c0_102, %c0_103] : memref<1x3xf32, #tpu.memory_space<vmem>>, vector<1x3xf32>
      %211 = vector.broadcast %210 : vector<1x3xf32> to vector<2x3xf32>
      %212 = arith.addf %209, %211 : vector<2x3xf32>
      %c0_104 = arith.constant 0 : index
      %c0_105 = arith.constant 0 : index
      %213 = vector.load %arg19[%c0_104, %c0_105] : memref<2x3xf32, #tpu.memory_space<vmem>>, vector<2x3xf32>
      tpu.vector_store %arg19[%c0_104, %c0_105], %212 {strides = array<i32>} : memref<2x3xf32, #tpu.memory_space<vmem>>, vector<2x3xf32>,
    } else {
    }
    return
  }
  func.func @transform_0(%arg0: i32, %arg1: i32) -> (i32, i32, i32) {
    %c0_i32 = arith.constant 0 : i32
    %c0_i32_0 = arith.constant 0 : i32
    %c0_i32_1 = arith.constant 0 : i32
    return %arg0, %c0_i32, %c0_i32_0 : i32, i32, i32
  }
  func.func @transform_1(%arg0: i32, %arg1: i32) -> (i32, i32, i32) {
    %c0_i32 = arith.constant 0 : i32
    %c0_i32_0 = arith.constant 0 : i32
    %c0_i32_1 = arith.constant 0 : i32
    return %arg1, %c0_i32, %c0_i32_0 : i32, i32, i32
  }
  func.func @transform_2(%arg0: i32, %arg1: i32) -> (i32, i32, i32) {
    %c0_i32 = arith.constant 0 : i32
    %c0_i32_0 = arith.constant 0 : i32
    %c0_i32_1 = arith.constant 0 : i32
    return %arg1, %c0_i32, %c0_i32_0 : i32, i32, i32
  }
  func.func @transform_3(%arg0: i32, %arg1: i32) -> (i32, i32, i32) {
    %c0_i32 = arith.constant 0 : i32
    %c0_i32_0 = arith.constant 0 : i32
    %c0_i32_1 = arith.constant 0 : i32
    return %arg1, %c0_i32, %c0_i32_0 : i32, i32, i32
  }
  func.func @transform_4(%arg0: i32, %arg1: i32) -> (i32, i32, i32) {
    %c0_i32 = arith.constant 0 : i32
    %c0_i32_0 = arith.constant 0 : i32
    %c0_i32_1 = arith.constant 0 : i32
    return %arg1, %c0_i32, %c0_i32_0 : i32, i32, i32
  }
  func.func @transform_5(%arg0: i32, %arg1: i32) -> (i32, i32, i32) {
    %c0_i32 = arith.constant 0 : i32
    %c0_i32_0 = arith.constant 0 : i32
    %c0_i32_1 = arith.constant 0 : i32
    return %arg1, %c0_i32, %c0_i32_0 : i32, i32, i32
  }
  func.func @transform_6(%arg0: i32, %arg1: i32) -> (i32, i32, i32) {
    %c0_i32 = arith.constant 0 : i32
    %c0_i32_0 = arith.constant 0 : i32
    %c0_i32_1 = arith.constant 0 : i32
    return %arg1, %c0_i32, %c0_i32_0 : i32, i32, i32
  }
  func.func @transform_7(%arg0: i32, %arg1: i32) -> (i32, i32, i32) {
    %c0_i32 = arith.constant 0 : i32
    %c0_i32_0 = arith.constant 0 : i32
    %c0_i32_1 = arith.constant 0 : i32
    return %arg1, %c0_i32, %c0_i32_0 : i32, i32, i32
  }
  func.func @transform_8(%arg0: i32, %arg1: i32) -> (i32, i32, i32) {
    %c0_i32 = arith.constant 0 : i32
    %c0_i32_0 = arith.constant 0 : i32
    %c0_i32_1 = arith.constant 0 : i32
    return %arg1, %c0_i32, %c0_i32_0 : i32, i32, i32
  }
  func.func @transform_9(%arg0: i32, %arg1: i32) -> (i32, i32, i32) {
    %c0_i32 = arith.constant 0 : i32
    %c0_i32_0 = arith.constant 0 : i32
    %c0_i32_1 = arith.constant 0 : i32
    return %arg1, %c0_i32, %c0_i32_0 : i32, i32, i32
  }
  func.func @transform_10(%arg0: i32, %arg1: i32) -> (i32, i32, i32) {
    %c0_i32 = arith.constant 0 : i32
    %c0_i32_0 = arith.constant 0 : i32
    %c0_i32_1 = arith.constant 0 : i32
    return %arg1, %c0_i32, %c0_i32_0 : i32, i32, i32
  }
  func.func @transform_11(%arg0: i32, %arg1: i32) -> (i32, i32, i32) {
    %c0_i32 = arith.constant 0 : i32
    %c0_i32_0 = arith.constant 0 : i32
    %c0_i32_1 = arith.constant 0 : i32
    return %arg1, %c0_i32, %c0_i32_0 : i32, i32, i32
  }
  func.func @transform_12(%arg0: i32, %arg1: i32) -> (i32, i32, i32) {
    %c0_i32 = arith.constant 0 : i32
    %c0_i32_0 = arith.constant 0 : i32
    %c0_i32_1 = arith.constant 0 : i32
    return %arg1, %c0_i32, %c0_i32_0 : i32, i32, i32
  }
  func.func @transform_13(%arg0: i32, %arg1: i32) -> (i32, i32) {
    %c0_i32 = arith.constant 0 : i32
    %c0_i32_0 = arith.constant 0 : i32
    %c0_i32_1 = arith.constant 0 : i32
    return %c0_i32, %c0_i32_0 : i32, i32
  }
  func.func @transform_14(%arg0: i32, %arg1: i32) -> (i32, i32) {
    %c0_i32 = arith.constant 0 : i32
    %c0_i32_0 = arith.constant 0 : i32
    %c0_i32_1 = arith.constant 0 : i32
    return %c0_i32, %c0_i32_0 : i32, i32
  }
  func.func @transform_15(%arg0: i32, %arg1: i32) -> (i32, i32) {
    %c0_i32 = arith.constant 0 : i32
    %c0_i32_0 = arith.constant 0 : i32
    %c0_i32_1 = arith.constant 0 : i32
    return %c0_i32, %c0_i32_0 : i32, i32
  }
  func.func @transform_16(%arg0: i32, %arg1: i32) -> (i32, i32) {
    %c0_i32 = arith.constant 0 : i32
    %c0_i32_0 = arith.constant 0 : i32
    %c0_i32_1 = arith.constant 0 : i32
    return %c0_i32, %c0_i32_0 : i32, i32
  }
  func.func @transform_17(%arg0: i32, %arg1: i32) -> (i32, i32) {
    %c0_i32 = arith.constant 0 : i32
    %c0_i32_0 = arith.constant 0 : i32
    return %arg0, %c0_i32 : i32, i32
  }
}

</mosaic_0001>

<llo_original>
// kernel: tpu_custom_call.1
$region0: #{tpu_custom_call.1}
  #allocation0 [shape = 'u32[]', space=smem, size = 0x4, offset = 0x4, fixed_abs, tag = 'smem constant byte address 0x4 - core index']
  #allocation1 [shape = 'u32[144,128]{1,0:T(1,128)}', space=vmem, size = 0x12000, scoped, tag = 'internal scratch']
  #allocation2 [shape = 'f32[16,32]{1,0:T(8,128)}', space=vmem, size = 0x2000, scoped, tag = 'scratch operand']
  %s0 = inlined_call_operand.vmem [shape: f32[2,8,32], index: 0, kind: input, shape index: {}]
  %s1 = inlined_call_operand.vmem [shape: f32[2,1,32], index: 1, kind: input, shape index: {}]
  %s2 = inlined_call_operand.vmem [shape: f32[2,1,32], index: 2, kind: input, shape index: {}]
  %s3 = inlined_call_operand.vmem [shape: f32[2,32,64], index: 3, kind: input, shape index: {}]
  %s4 = inlined_call_operand.vmem [shape: f32[2,32,64], index: 4, kind: input, shape index: {}]
  %s5 = inlined_call_operand.vmem [shape: f32[2,1,64], index: 5, kind: input, shape index: {}]
  %s6 = inlined_call_operand.vmem [shape: f32[2,1,64], index: 6, kind: input, shape index: {}]
  %s7 = inlined_call_operand.vmem [shape: f32[2,1,64], index: 7, kind: input, shape index: {}]
  %s8 = inlined_call_operand.vmem [shape: f32[2,1,64], index: 8, kind: input, shape index: {}]
  %s9 = inlined_call_operand.vmem [shape: f32[2,1,64], index: 9, kind: input, shape index: {}]
  %s10 = inlined_call_operand.vmem [shape: f32[2,1,64], index: 10, kind: input, shape index: {}]
  %s11 = inlined_call_operand.vmem [shape: f32[2,64,32], index: 11, kind: input, shape index: {}]
  %s12 = inlined_call_operand.vmem [shape: f32[2,1,32], index: 12, kind: input, shape index: {}]
  %s13 = inlined_call_operand.vmem [shape: f32[1,32], index: 13, kind: input, shape index: {}]
  %s14 = inlined_call_operand.vmem [shape: f32[1,32], index: 14, kind: input, shape index: {}]
  %s15 = inlined_call_operand.vmem [shape: f32[32,3], index: 15, kind: input, shape index: {}]
  %s16 = inlined_call_operand.vmem [shape: f32[1,3], index: 16, kind: input, shape index: {}]
  %s17 = inlined_call_operand.hbm [shape: f32[2,3], index: 17, kind: output, shape index: {}]
  %s18 = sld [smem:[#allocation0]]
  $region109: #{tpu_custom_call.1} parent=0
    _
  %s20 = ssub.s32 1, %s18
  %s21 = scalar_select 0, %s20, %s18
  $region1: #{tpu_custom_call.1} parent=0
    #allocation3 [shape = 'u8[1024]{0}', space=vmem, size = 0x400, scoped, tag = 'output window, operand 0, single buffered']
    #allocation4 [shape = 's32[2]{0}', space=sflag, size = 0x8, scoped, tag = 'scoped memory for tpu_custom_call.1']
    %22 = vsyncpa [#allocation4], 0
    loop: start=0, step=1, limit=4
    $region2: #{tpu_custom_call.1} parent=1 // loop_pre_header
      _
    $region3: #{tpu_custom_call.1} parent=1 // loop_header
      %s24 = sphi 0, %s28
      %p25 = scmp.ge.s32.totalorder %s24, 4
      %s31 = sphi 0, %s43
      %s32 = sphi 0, %s39
      %s33 = sphi 0, %s31
      %s34 = sphi 0, %s32
      %s35 = sphi 0, %s33
      %s36 = sphi 0, %s34
      %s46 = sphi 0, %s48
      %s49 = sphi 0, %s46
      %s50 = sphi 0, %s49
      %s66 = sphi 0, %s50
      %s72 = sphi 0, %s74
      %s75 = sphi 0, %s72
      %s76 = sphi 0, %s75
      %s92 = sphi 0, %s76
      %s98 = sphi 0, %s100
      %s101 = sphi 0, %s98
      %s102 = sphi 0, %s101
      %s118 = sphi 0, %s102
      %s124 = sphi 0, %s126
      %s127 = sphi 0, %s124
      %s128 = sphi 0, %s127
      %s144 = sphi 0, %s128
      %s150 = sphi 0, %s152
      %s153 = sphi 0, %s150
      %s154 = sphi 0, %s153
      %s170 = sphi 0, %s154
      %s176 = sphi 0, %s178
      %s179 = sphi 0, %s176
      %s180 = sphi 0, %s179
      %s196 = sphi 0, %s180
      %s202 = sphi 0, %s204
      %s205 = sphi 0, %s202
      %s206 = sphi 0, %s205
      %s222 = sphi 0, %s206
      %s228 = sphi 0, %s230
      %s231 = sphi 0, %s228
      %s232 = sphi 0, %s231
      %s248 = sphi 0, %s232
      %s254 = sphi 0, %s256
      %s257 = sphi 0, %s254
      %s258 = sphi 0, %s257
      %s274 = sphi 0, %s258
      %s280 = sphi 0, %s282
      %s283 = sphi 0, %s280
      %s284 = sphi 0, %s283
      %s300 = sphi 0, %s284
      %s306 = sphi 0, %s308
      %s309 = sphi 0, %s306
      %s310 = sphi 0, %s309
      %s326 = sphi 0, %s310
      %s332 = sphi 0, %s334
      %s335 = sphi 0, %s332
      %s336 = sphi 0, %s335
      %s352 = sphi 0, %s336
      %s358 = sphi 0, %s360
      %s361 = sphi 0, %s358
      %s362 = sphi 0, %s361
      %s378 = sphi 0, %s362
      %s382 = sphi 0, %s382
      %s384 = sphi 0, %s382
      %s385 = sphi 0, %s384
      %s399 = sphi 0, %s385
      %s403 = sphi 0, %s403
      %s405 = sphi 0, %s403
      %s406 = sphi 0, %s405
      %s420 = sphi 0, %s406
      %s424 = sphi 0, %s424
      %s426 = sphi 0, %s424
      %s427 = sphi 0, %s426
      %s441 = sphi 0, %s427
      %s445 = sphi 0, %s445
      %s447 = sphi 0, %s445
      %s448 = sphi 0, %s447
      %s462 = sphi 0, %s448
      %s468 = sphi 0, %s470
      %s471 = sphi 0, %s468
      %s472 = sphi 0, %s471
      %s488 = sphi 0, %s472
    $region4: #{tpu_custom_call.1} parent=1 // loop_header_branch
      %27 = sbr.rel (%p25) target = $region8
    $region5: #{tpu_custom_call.1} parent=1 // loop_body
      %s29 = ssub.s32 %s24, 1
      %s30 = ssub.s32 %s24, 2
      %s37 = sadd.s32 1, %s32
      %p38 = scmp.ge.s32.totalorder %s37, 2
      %s39 = scalar_select %p38, 0, %s37
      %s40 = sadd.s32 1, %s31
      %s41 = scalar_select %p38, %s40, %s31
      %p42 = scmp.ge.s32.totalorder %s41, 1
      %s43 = scalar_select %p42, 0, %s41
      %s44 = ssub.s32 %s31, %s43
      %p45 = scmp.eq.s32.totalorder %s44, 0
      %s47 = sadd.s32 %s46, 1
      %s48 = scalar_select %p45, %s46, %s47
      %p51 = pneg %p45
      %p52 = scmp.eq.s32.totalorder %s24, 1
      %p53 = por %p51, %p52
      %p54 = scmp.ne.s32.totalorder %s46, %s49
      %p55 = scmp.eq.s32.totalorder %s24, 0
      %p56 = por %p54, %p55
      %p57 = scmp.ne.s32.totalorder %s46, %s49
      %p58 = scmp.eq.s32.totalorder %s29, 1
      %p59 = por %p57, %p58
      %p60 = scmp.ne.s32.totalorder %s49, %s50
      %p61 = scmp.eq.s32.totalorder %s29, 0
      %p62 = por %p60, %p61
      %p63 = scmp.ne.s32.totalorder %s49, %s50
      %p64 = scmp.eq.s32.totalorder %s30, 1
      %p65 = por %p63, %p64
      %p67 = scmp.ne.s32.totalorder %s50, %s66
      %p68 = scmp.eq.s32.totalorder %s30, 0
      %p69 = por %p67, %p68
      %s70 = ssub.s32 %s32, %s39
      %p71 = scmp.eq.s32.totalorder %s70, 0
      %s73 = sadd.s32 %s72, 1
      %s74 = scalar_select %p71, %s72, %s73
      %p77 = pneg %p71
      %p78 = scmp.eq.s32.totalorder %s24, 1
      %p79 = por %p77, %p78
      %p80 = scmp.ne.s32.totalorder %s72, %s75
      %p81 = scmp.eq.s32.totalorder %s24, 0
      %p82 = por %p80, %p81
      %p83 = scmp.ne.s32.totalorder %s72, %s75
      %p84 = scmp.eq.s32.totalorder %s29, 1
      %p85 = por %p83, %p84
      %p86 = scmp.ne.s32.totalorder %s75, %s76
      %p87 = scmp.eq.s32.totalorder %s29, 0
      %p88 = por %p86, %p87
      %p89 = scmp.ne.s32.totalorder %s75, %s76
      %p90 = scmp.eq.s32.totalorder %s30, 1
      %p91 = por %p89, %p90
      %p93 = scmp.ne.s32.totalorder %s76, %s92
      %p94 = scmp.eq.s32.totalorder %s30, 0
      %p95 = por %p93, %p94
      %s96 = ssub.s32 %s32, %s39
      %p97 = scmp.eq.s32.totalorder %s96, 0
      %s99 = sadd.s32 %s98, 1
      %s100 = scalar_select %p97, %s98, %s99
      %p103 = pneg %p97
      %p104 = scmp.eq.s32.totalorder %s24, 1
      %p105 = por %p103, %p104
      %p106 = scmp.ne.s32.totalorder %s98, %s101
      %p107 = scmp.eq.s32.totalorder %s24, 0
      %p108 = por %p106, %p107
      %p109 = scmp.ne.s32.totalorder %s98, %s101
      %p110 = scmp.eq.s32.totalorder %s29, 1
      %p111 = por %p109, %p110
      %p112 = scmp.ne.s32.totalorder %s101, %s102
      %p113 = scmp.eq.s32.totalorder %s29, 0
      %p114 = por %p112, %p113
      %p115 = scmp.ne.s32.totalorder %s101, %s102
      %p116 = scmp.eq.s32.totalorder %s30, 1
      %p117 = por %p115, %p116
      %p119 = scmp.ne.s32.totalorder %s102, %s118
      %p120 = scmp.eq.s32.totalorder %s30, 0
      %p121 = por %p119, %p120
      %s122 = ssub.s32 %s32, %s39
      %p123 = scmp.eq.s32.totalorder %s122, 0
      %s125 = sadd.s32 %s124, 1
      %s126 = scalar_select %p123, %s124, %s125
      %p129 = pneg %p123
      %p130 = scmp.eq.s32.totalorder %s24, 1
      %p131 = por %p129, %p130
      %p132 = scmp.ne.s32.totalorder %s124, %s127
      %p133 = scmp.eq.s32.totalorder %s24, 0
      %p134 = por %p132, %p133
      %p135 = scmp.ne.s32.totalorder %s124, %s127
      %p136 = scmp.eq.s32.totalorder %s29, 1
      %p137 = por %p135, %p136
      %p138 = scmp.ne.s32.totalorder %s127, %s128
      %p139 = scmp.eq.s32.totalorder %s29, 0
      %p140 = por %p138, %p139
      %p141 = scmp.ne.s32.totalorder %s127, %s128
      %p142 = scmp.eq.s32.totalorder %s30, 1
      %p143 = por %p141, %p142
      %p145 = scmp.ne.s32.totalorder %s128, %s144
      %p146 = scmp.eq.s32.totalorder %s30, 0
      %p147 = por %p145, %p146
      %s148 = ssub.s32 %s32, %s39
      %p149 = scmp.eq.s32.totalorder %s148, 0
      %s151 = sadd.s32 %s150, 1
      %s152 = scalar_select %p149, %s150, %s151
      %p155 = pneg %p149
      %p156 = scmp.eq.s32.totalorder %s24, 1
      %p157 = por %p155, %p156
      %p158 = scmp.ne.s32.totalorder %s150, %s153
      %p159 = scmp.eq.s32.totalorder %s24, 0
      %p160 = por %p158, %p159
      %p161 = scmp.ne.s32.totalorder %s150, %s153
      %p162 = scmp.eq.s32.totalorder %s29, 1
      %p163 = por %p161, %p162
      %p164 = scmp.ne.s32.totalorder %s153, %s154
      %p165 = scmp.eq.s32.totalorder %s29, 0
      %p166 = por %p164, %p165
      %p167 = scmp.ne.s32.totalorder %s153, %s154
      %p168 = scmp.eq.s32.totalorder %s30, 1
      %p169 = por %p167, %p168
      %p171 = scmp.ne.s32.totalorder %s154, %s170
      %p172 = scmp.eq.s32.totalorder %s30, 0
      %p173 = por %p171, %p172
      %s174 = ssub.s32 %s32, %s39
      %p175 = scmp.eq.s32.totalorder %s174, 0
      %s177 = sadd.s32 %s176, 1
      %s178 = scalar_select %p175, %s176, %s177
      %p181 = pneg %p175
      %p182 = scmp.eq.s32.totalorder %s24, 1
      %p183 = por %p181, %p182
      %p184 = scmp.ne.s32.totalorder %s176, %s179
      %p185 = scmp.eq.s32.totalorder %s24, 0
      %p186 = por %p184, %p185
      %p187 = scmp.ne.s32.totalorder %s176, %s179
      %p188 = scmp.eq.s32.totalorder %s29, 1
      %p189 = por %p187, %p188
      %p190 = scmp.ne.s32.totalorder %s179, %s180
      %p191 = scmp.eq.s32.totalorder %s29, 0
      %p192 = por %p190, %p191
      %p193 = scmp.ne.s32.totalorder %s179, %s180
      %p194 = scmp.eq.s32.totalorder %s30, 1
      %p195 = por %p193, %p194
      %p197 = scmp.ne.s32.totalorder %s180, %s196
      %p198 = scmp.eq.s32.totalorder %s30, 0
      %p199 = por %p197, %p198
      %s200 = ssub.s32 %s32, %s39
      %p201 = scmp.eq.s32.totalorder %s200, 0
      %s203 = sadd.s32 %s202, 1
      %s204 = scalar_select %p201, %s202, %s203
      %p207 = pneg %p201
      %p208 = scmp.eq.s32.totalorder %s24, 1
      %p209 = por %p207, %p208
      %p210 = scmp.ne.s32.totalorder %s202, %s205
      %p211 = scmp.eq.s32.totalorder %s24, 0
      %p212 = por %p210, %p211
      %p213 = scmp.ne.s32.totalorder %s202, %s205
      %p214 = scmp.eq.s32.totalorder %s29, 1
      %p215 = por %p213, %p214
      %p216 = scmp.ne.s32.totalorder %s205, %s206
      %p217 = scmp.eq.s32.totalorder %s29, 0
      %p218 = por %p216, %p217
      %p219 = scmp.ne.s32.totalorder %s205, %s206
      %p220 = scmp.eq.s32.totalorder %s30, 1
      %p221 = por %p219, %p220
      %p223 = scmp.ne.s32.totalorder %s206, %s222
      %p224 = scmp.eq.s32.totalorder %s30, 0
      %p225 = por %p223, %p224
      %s226 = ssub.s32 %s32, %s39
      %p227 = scmp.eq.s32.totalorder %s226, 0
      %s229 = sadd.s32 %s228, 1
      %s230 = scalar_select %p227, %s228, %s229
      %p233 = pneg %p227
      %p234 = scmp.eq.s32.totalorder %s24, 1
      %p235 = por %p233, %p234
      %p236 = scmp.ne.s32.totalorder %s228, %s231
      %p237 = scmp.eq.s32.totalorder %s24, 0
      %p238 = por %p236, %p237
      %p239 = scmp.ne.s32.totalorder %s228, %s231
      %p240 = scmp.eq.s32.totalorder %s29, 1
      %p241 = por %p239, %p240
      %p242 = scmp.ne.s32.totalorder %s231, %s232
      %p243 = scmp.eq.s32.totalorder %s29, 0
      %p244 = por %p242, %p243
      %p245 = scmp.ne.s32.totalorder %s231, %s232
      %p246 = scmp.eq.s32.totalorder %s30, 1
      %p247 = por %p245, %p246
      %p249 = scmp.ne.s32.totalorder %s232, %s248
      %p250 = scmp.eq.s32.totalorder %s30, 0
      %p251 = por %p249, %p250
      %s252 = ssub.s32 %s32, %s39
      %p253 = scmp.eq.s32.totalorder %s252, 0
      %s255 = sadd.s32 %s254, 1
      %s256 = scalar_select %p253, %s254, %s255
      %p259 = pneg %p253
      %p260 = scmp.eq.s32.totalorder %s24, 1
      %p261 = por %p259, %p260
      %p262 = scmp.ne.s32.totalorder %s254, %s257
      %p263 = scmp.eq.s32.totalorder %s24, 0
      %p264 = por %p262, %p263
      %p265 = scmp.ne.s32.totalorder %s254, %s257
      %p266 = scmp.eq.s32.totalorder %s29, 1
      %p267 = por %p265, %p266
      %p268 = scmp.ne.s32.totalorder %s257, %s258
      %p269 = scmp.eq.s32.totalorder %s29, 0
      %p270 = por %p268, %p269
      %p271 = scmp.ne.s32.totalorder %s257, %s258
      %p272 = scmp.eq.s32.totalorder %s30, 1
      %p273 = por %p271, %p272
      %p275 = scmp.ne.s32.totalorder %s258, %s274
      %p276 = scmp.eq.s32.totalorder %s30, 0
      %p277 = por %p275, %p276
      %s278 = ssub.s32 %s32, %s39
      %p279 = scmp.eq.s32.totalorder %s278, 0
      %s281 = sadd.s32 %s280, 1
      %s282 = scalar_select %p279, %s280, %s281
      %p285 = pneg %p279
      %p286 = scmp.eq.s32.totalorder %s24, 1
      %p287 = por %p285, %p286
      %p288 = scmp.ne.s32.totalorder %s280, %s283
      %p289 = scmp.eq.s32.totalorder %s24, 0
      %p290 = por %p288, %p289
      %p291 = scmp.ne.s32.totalorder %s280, %s283
      %p292 = scmp.eq.s32.totalorder %s29, 1
      %p293 = por %p291, %p292
      %p294 = scmp.ne.s32.totalorder %s283, %s284
      %p295 = scmp.eq.s32.totalorder %s29, 0
      %p296 = por %p294, %p295
      %p297 = scmp.ne.s32.totalorder %s283, %s284
      %p298 = scmp.eq.s32.totalorder %s30, 1
      %p299 = por %p297, %p298
      %p301 = scmp.ne.s32.totalorder %s284, %s300
      %p302 = scmp.eq.s32.totalorder %s30, 0
      %p303 = por %p301, %p302
      %s304 = ssub.s32 %s32, %s39
      %p305 = scmp.eq.s32.totalorder %s304, 0
      %s307 = sadd.s32 %s306, 1
      %s308 = scalar_select %p305, %s306, %s307
      %p311 = pneg %p305
      %p312 = scmp.eq.s32.totalorder %s24, 1
      %p313 = por %p311, %p312
      %p314 = scmp.ne.s32.totalorder %s306, %s309
      %p315 = scmp.eq.s32.totalorder %s24, 0
      %p316 = por %p314, %p315
      %p317 = scmp.ne.s32.totalorder %s306, %s309
      %p318 = scmp.eq.s32.totalorder %s29, 1
      %p319 = por %p317, %p318
      %p320 = scmp.ne.s32.totalorder %s309, %s310
      %p321 = scmp.eq.s32.totalorder %s29, 0
      %p322 = por %p320, %p321
      %p323 = scmp.ne.s32.totalorder %s309, %s310
      %p324 = scmp.eq.s32.totalorder %s30, 1
      %p325 = por %p323, %p324
      %p327 = scmp.ne.s32.totalorder %s310, %s326
      %p328 = scmp.eq.s32.totalorder %s30, 0
      %p329 = por %p327, %p328
      %s330 = ssub.s32 %s32, %s39
      %p331 = scmp.eq.s32.totalorder %s330, 0
      %s333 = sadd.s32 %s332, 1
      %s334 = scalar_select %p331, %s332, %s333
      %p337 = pneg %p331
      %p338 = scmp.eq.s32.totalorder %s24, 1
      %p339 = por %p337, %p338
      %p340 = scmp.ne.s32.totalorder %s332, %s335
      %p341 = scmp.eq.s32.totalorder %s24, 0
      %p342 = por %p340, %p341
      %p343 = scmp.ne.s32.totalorder %s332, %s335
      %p344 = scmp.eq.s32.totalorder %s29, 1
      %p345 = por %p343, %p344
      %p346 = scmp.ne.s32.totalorder %s335, %s336
      %p347 = scmp.eq.s32.totalorder %s29, 0
      %p348 = por %p346, %p347
      %p349 = scmp.ne.s32.totalorder %s335, %s336
      %p350 = scmp.eq.s32.totalorder %s30, 1
      %p351 = por %p349, %p350
      %p353 = scmp.ne.s32.totalorder %s336, %s352
      %p354 = scmp.eq.s32.totalorder %s30, 0
      %p355 = por %p353, %p354
      %s356 = ssub.s32 %s32, %s39
      %p357 = scmp.eq.s32.totalorder %s356, 0
      %s359 = sadd.s32 %s358, 1
      %s360 = scalar_select %p357, %s358, %s359
      %p363 = pneg %p357
      %p364 = scmp.eq.s32.totalorder %s24, 1
      %p365 = por %p363, %p364
      %p366 = scmp.ne.s32.totalorder %s358, %s361
      %p367 = scmp.eq.s32.totalorder %s24, 0
      %p368 = por %p366, %p367
      %p369 = scmp.ne.s32.totalorder %s358, %s361
      %p370 = scmp.eq.s32.totalorder %s29, 1
      %p371 = por %p369, %p370
      %p372 = scmp.ne.s32.totalorder %s361, %s362
      %p373 = scmp.eq.s32.totalorder %s29, 0
      %p374 = por %p372, %p373
      %p375 = scmp.ne.s32.totalorder %s361, %s362
      %p376 = scmp.eq.s32.totalorder %s30, 1
      %p377 = por %p375, %p376
      %p379 = scmp.ne.s32.totalorder %s362, %s378
      %p380 = scmp.eq.s32.totalorder %s30, 0
      %p381 = por %p379, %p380
      %s383 = sadd.s32 %s382, 1
      %p386 = scmp.eq.s32.totalorder %s24, 1
      %p387 = scmp.ne.s32.totalorder %s382, %s384
      %p388 = scmp.eq.s32.totalorder %s24, 0
      %p389 = por %p387, %p388
      %p390 = scmp.ne.s32.totalorder %s382, %s384
      %p391 = scmp.eq.s32.totalorder %s29, 1
      %p392 = por %p390, %p391
      %p393 = scmp.ne.s32.totalorder %s384, %s385
      %p394 = scmp.eq.s32.totalorder %s29, 0
      %p395 = por %p393, %p394
      %p396 = scmp.ne.s32.totalorder %s384, %s385
      %p397 = scmp.eq.s32.totalorder %s30, 1
      %p398 = por %p396, %p397
      %p400 = scmp.ne.s32.totalorder %s385, %s399
      %p401 = scmp.eq.s32.totalorder %s30, 0
      %p402 = por %p400, %p401
      %s404 = sadd.s32 %s403, 1
      %p407 = scmp.eq.s32.totalorder %s24, 1
      %p408 = scmp.ne.s32.totalorder %s403, %s405
      %p409 = scmp.eq.s32.totalorder %s24, 0
      %p410 = por %p408, %p409
      %p411 = scmp.ne.s32.totalorder %s403, %s405
      %p412 = scmp.eq.s32.totalorder %s29, 1
      %p413 = por %p411, %p412
      %p414 = scmp.ne.s32.totalorder %s405, %s406
      %p415 = scmp.eq.s32.totalorder %s29, 0
      %p416 = por %p414, %p415
      %p417 = scmp.ne.s32.totalorder %s405, %s406
      %p418 = scmp.eq.s32.totalorder %s30, 1
      %p419 = por %p417, %p418
      %p421 = scmp.ne.s32.totalorder %s406, %s420
      %p422 = scmp.eq.s32.totalorder %s30, 0
      %p423 = por %p421, %p422
      %s425 = sadd.s32 %s424, 1
      %p428 = scmp.eq.s32.totalorder %s24, 1
      %p429 = scmp.ne.s32.totalorder %s424, %s426
      %p430 = scmp.eq.s32.totalorder %s24, 0
      %p431 = por %p429, %p430
      %p432 = scmp.ne.s32.totalorder %s424, %s426
      %p433 = scmp.eq.s32.totalorder %s29, 1
      %p434 = por %p432, %p433
      %p435 = scmp.ne.s32.totalorder %s426, %s427
      %p436 = scmp.eq.s32.totalorder %s29, 0
      %p437 = por %p435, %p436
      %p438 = scmp.ne.s32.totalorder %s426, %s427
      %p439 = scmp.eq.s32.totalorder %s30, 1
      %p440 = por %p438, %p439
      %p442 = scmp.ne.s32.totalorder %s427, %s441
      %p443 = scmp.eq.s32.totalorder %s30, 0
      %p444 = por %p442, %p443
      %s446 = sadd.s32 %s445, 1
      %p449 = scmp.eq.s32.totalorder %s24, 1
      %p450 = scmp.ne.s32.totalorder %s445, %s447
      %p451 = scmp.eq.s32.totalorder %s24, 0
      %p452 = por %p450, %p451
      %p453 = scmp.ne.s32.totalorder %s445, %s447
      %p454 = scmp.eq.s32.totalorder %s29, 1
      %p455 = por %p453, %p454
      %p456 = scmp.ne.s32.totalorder %s447, %s448
      %p457 = scmp.eq.s32.totalorder %s29, 0
      %p458 = por %p456, %p457
      %p459 = scmp.ne.s32.totalorder %s447, %s448
      %p460 = scmp.eq.s32.totalorder %s30, 1
      %p461 = por %p459, %p460
      %p463 = scmp.ne.s32.totalorder %s448, %s462
      %p464 = scmp.eq.s32.totalorder %s30, 0
      %p465 = por %p463, %p464
      %s466 = ssub.s32 %s31, %s43
      %p467 = scmp.eq.s32.totalorder %s466, 0
      %s469 = sadd.s32 %s468, 1
      %s470 = scalar_select %p467, %s468, %s469
      %p473 = pneg %p467
      %p474 = scmp.eq.s32.totalorder %s24, 1
      %p475 = por %p473, %p474
      %p476 = scmp.ne.s32.totalorder %s468, %s471
      %p477 = scmp.eq.s32.totalorder %s24, 0
      %p478 = por %p476, %p477
      %p479 = scmp.ne.s32.totalorder %s468, %s471
      %p480 = scmp.eq.s32.totalorder %s29, 1
      %p481 = por %p479, %p480
      %p482 = scmp.ne.s32.totalorder %s471, %s472
      %p483 = scmp.eq.s32.totalorder %s29, 0
      %p484 = por %p482, %p483
      %p485 = scmp.ne.s32.totalorder %s471, %s472
      %p486 = scmp.eq.s32.totalorder %s30, 1
      %p487 = por %p485, %p486
      %p489 = scmp.ne.s32.totalorder %s472, %s488
      %p490 = scmp.eq.s32.totalorder %s30, 0
      %p491 = por %p489, %p490
      %p492 = scmp.le.s32.totalorder 1, %s24
      %p493 = scmp.lt.s32.totalorder %s24, 3
      %p494 = pnand %p492, %p493
      %p495 = pneg %p494
      // Predicated region
      $region9: #{tpu_custom_call.1} parent=5 // pred_check
        _
      $region10: #{tpu_custom_call.1} parent=5 // pred_check_branch
        %497 = sbr.rel (%p494) target = $region12
      $region11: #{tpu_custom_call.1} parent=5 // pred_region
        %s498 = ssub.s32 %s24, 1
        // Predicated region
        $region13: #{tpu_custom_call.1} parent=11 // pred_check
          %p499 = pneg %p62
        $region14: #{tpu_custom_call.1} parent=11 // pred_check_branch
          %501 = sbr.rel (%p499) target = $region16
        $region15: #{tpu_custom_call.1} parent=11 // pred_region
          %s502 = smul.u32 2, %s33
          %p503 = scmp.lt.s32.totalorder %s502, 1
          %s504 = scalar_select %p503, %s502, 1
          %s505 = smul.addr %s504, 8
          %s506 = scalar_lea.vmem %s0, %s505
          %s507 = smul.u32 2, %s33
        $region16: #{tpu_custom_call.1} parent=11 // pred_fallthru
          _
        // Predicated region
        $region17: #{tpu_custom_call.1} parent=11 // pred_check
          %p508 = pneg %p395
        $region18: #{tpu_custom_call.1} parent=11 // pred_check_branch
          %510 = sbr.rel (%p508) target = $region20
        $region19: #{tpu_custom_call.1} parent=11 // pred_region
          _
        $region20: #{tpu_custom_call.1} parent=11 // pred_fallthru
          _
        // Predicated region
        $region21: #{tpu_custom_call.1} parent=11 // pred_check
          %p511 = pneg %p416
        $region22: #{tpu_custom_call.1} parent=11 // pred_check_branch
          %513 = sbr.rel (%p511) target = $region24
        $region23: #{tpu_custom_call.1} parent=11 // pred_region
          _
        $region24: #{tpu_custom_call.1} parent=11 // pred_fallthru
          _
        // Predicated region
        $region25: #{tpu_custom_call.1} parent=11 // pred_check
          %p514 = pneg %p437
        $region26: #{tpu_custom_call.1} parent=11 // pred_check_branch
          %516 = sbr.rel (%p514) target = $region28
        $region27: #{tpu_custom_call.1} parent=11 // pred_region
          _
        $region28: #{tpu_custom_call.1} parent=11 // pred_fallthru
          _
        // Predicated region
        $region29: #{tpu_custom_call.1} parent=11 // pred_check
          %p517 = pneg %p458
        $region30: #{tpu_custom_call.1} parent=11 // pred_check_branch
          %519 = sbr.rel (%p517) target = $region32
        $region31: #{tpu_custom_call.1} parent=11 // pred_region
          _
        $region32: #{tpu_custom_call.1} parent=11 // pred_fallthru
          _
      $region12: #{tpu_custom_call.1} parent=5 // pred_fallthru
        _
      %p520 = scmp.lt.s32.totalorder %s24, 2
      // Predicated region
      $region33: #{tpu_custom_call.1} parent=5 // pred_check
        %p521 = pneg %p520
      $region34: #{tpu_custom_call.1} parent=5 // pred_check_branch
        %523 = sbr.rel (%p521) target = $region36
      $region35: #{tpu_custom_call.1} parent=5 // pred_region
        // Predicated region
        $region37: #{tpu_custom_call.1} parent=35 // pred_check
          %p524 = pneg %p82
        $region38: #{tpu_custom_call.1} parent=35 // pred_check_branch
          %526 = sbr.rel (%p524) target = $region40
        $region39: #{tpu_custom_call.1} parent=35 // pred_region
          %p527 = scmp.lt.s32.totalorder %s32, 1
          %s528 = scalar_select %p527, %s32, 1
          %s529 = scalar_lea.vmem %s1, %s528
        $region40: #{tpu_custom_call.1} parent=35 // pred_fallthru
          _
        // Predicated region
        $region41: #{tpu_custom_call.1} parent=35 // pred_check
          %p530 = pneg %p108
        $region42: #{tpu_custom_call.1} parent=35 // pred_check_branch
          %532 = sbr.rel (%p530) target = $region44
        $region43: #{tpu_custom_call.1} parent=35 // pred_region
          %p533 = scmp.lt.s32.totalorder %s32, 1
          %s534 = scalar_select %p533, %s32, 1
          %s535 = scalar_lea.vmem %s2, %s534
        $region44: #{tpu_custom_call.1} parent=35 // pred_fallthru
          _
        // Predicated region
        $region45: #{tpu_custom_call.1} parent=35 // pred_check
          %p536 = pneg %p134
        $region46: #{tpu_custom_call.1} parent=35 // pred_check_branch
          %538 = sbr.rel (%p536) target = $region48
        $region47: #{tpu_custom_call.1} parent=35 // pred_region
          %p539 = scmp.lt.s32.totalorder %s32, 1
          %s540 = scalar_select %p539, %s32, 1
          %s541 = smul.addr %s540, 4
          %s542 = smul.addr %s541, 8
          %s543 = scalar_lea.vmem %s3, %s542
        $region48: #{tpu_custom_call.1} parent=35 // pred_fallthru
          _
        // Predicated region
        $region49: #{tpu_custom_call.1} parent=35 // pred_check
          %p544 = pneg %p160
        $region50: #{tpu_custom_call.1} parent=35 // pred_check_branch
          %546 = sbr.rel (%p544) target = $region52
        $region51: #{tpu_custom_call.1} parent=35 // pred_region
          %p547 = scmp.lt.s32.totalorder %s32, 1
          %s548 = scalar_select %p547, %s32, 1
          %s549 = smul.addr %s548, 4
          %s550 = smul.addr %s549, 8
          %s551 = scalar_lea.vmem %s4, %s550
        $region52: #{tpu_custom_call.1} parent=35 // pred_fallthru
          _
        // Predicated region
        $region53: #{tpu_custom_call.1} parent=35 // pred_check
          %p552 = pneg %p186
        $region54: #{tpu_custom_call.1} parent=35 // pred_check_branch
          %554 = sbr.rel (%p552) target = $region56
        $region55: #{tpu_custom_call.1} parent=35 // pred_region
          %p555 = scmp.lt.s32.totalorder %s32, 1
          %s556 = scalar_select %p555, %s32, 1
          %s557 = scalar_lea.vmem %s5, %s556
        $region56: #{tpu_custom_call.1} parent=35 // pred_fallthru
          _
        // Predicated region
        $region57: #{tpu_custom_call.1} parent=35 // pred_check
          %p558 = pneg %p212
        $region58: #{tpu_custom_call.1} parent=35 // pred_check_branch
          %560 = sbr.rel (%p558) target = $region60
        $region59: #{tpu_custom_call.1} parent=35 // pred_region
          %p561 = scmp.lt.s32.totalorder %s32, 1
          %s562 = scalar_select %p561, %s32, 1
          %s563 = scalar_lea.vmem %s6, %s562
        $region60: #{tpu_custom_call.1} parent=35 // pred_fallthru
          _
        // Predicated region
        $region61: #{tpu_custom_call.1} parent=35 // pred_check
          %p564 = pneg %p238
        $region62: #{tpu_custom_call.1} parent=35 // pred_check_branch
          %566 = sbr.rel (%p564) target = $region64
        $region63: #{tpu_custom_call.1} parent=35 // pred_region
          %p567 = scmp.lt.s32.totalorder %s32, 1
          %s568 = scalar_select %p567, %s32, 1
          %s569 = scalar_lea.vmem %s7, %s568
        $region64: #{tpu_custom_call.1} parent=35 // pred_fallthru
          _
        // Predicated region
        $region65: #{tpu_custom_call.1} parent=35 // pred_check
          %p570 = pneg %p264
        $region66: #{tpu_custom_call.1} parent=35 // pred_check_branch
          %572 = sbr.rel (%p570) target = $region68
        $region67: #{tpu_custom_call.1} parent=35 // pred_region
          %p573 = scmp.lt.s32.totalorder %s32, 1
          %s574 = scalar_select %p573, %s32, 1
          %s575 = scalar_lea.vmem %s8, %s574
        $region68: #{tpu_custom_call.1} parent=35 // pred_fallthru
          _
        // Predicated region
        $region69: #{tpu_custom_call.1} parent=35 // pred_check
          %p576 = pneg %p290
        $region70: #{tpu_custom_call.1} parent=35 // pred_check_branch
          %578 = sbr.rel (%p576) target = $region72
        $region71: #{tpu_custom_call.1} parent=35 // pred_region
          %p579 = scmp.lt.s32.totalorder %s32, 1
          %s580 = scalar_select %p579, %s32, 1
          %s581 = scalar_lea.vmem %s9, %s580
        $region72: #{tpu_custom_call.1} parent=35 // pred_fallthru
          _
        // Predicated region
        $region73: #{tpu_custom_call.1} parent=35 // pred_check
          %p582 = pneg %p316
        $region74: #{tpu_custom_call.1} parent=35 // pred_check_branch
          %584 = sbr.rel (%p582) target = $region76
        $region75: #{tpu_custom_call.1} parent=35 // pred_region
          %p585 = scmp.lt.s32.totalorder %s32, 1
          %s586 = scalar_select %p585, %s32, 1
          %s587 = scalar_lea.vmem %s10, %s586
        $region76: #{tpu_custom_call.1} parent=35 // pred_fallthru
          _
        // Predicated region
        $region77: #{tpu_custom_call.1} parent=35 // pred_check
          %p588 = pneg %p342
        $region78: #{tpu_custom_call.1} parent=35 // pred_check_branch
          %590 = sbr.rel (%p588) target = $region80
        $region79: #{tpu_custom_call.1} parent=35 // pred_region
          %p591 = scmp.lt.s32.totalorder %s32, 1
          %s592 = scalar_select %p591, %s32, 1
          %s593 = smul.addr %s592, 8
          %s594 = smul.addr %s593, 8
          %s595 = scalar_lea.vmem %s11, %s594
        $region80: #{tpu_custom_call.1} parent=35 // pred_fallthru
          _
        // Predicated region
        $region81: #{tpu_custom_call.1} parent=35 // pred_check
          %p596 = pneg %p368
        $region82: #{tpu_custom_call.1} parent=35 // pred_check_branch
          %598 = sbr.rel (%p596) target = $region84
        $region83: #{tpu_custom_call.1} parent=35 // pred_region
          %p599 = scmp.lt.s32.totalorder %s32, 1
          %s600 = scalar_select %p599, %s32, 1
          %s601 = scalar_lea.vmem %s12, %s600
        $region84: #{tpu_custom_call.1} parent=35 // pred_fallthru
          _
      $region36: #{tpu_custom_call.1} parent=5 // pred_fallthru
        _
      %p602 = scmp.le.s32.totalorder 1, %s24
      %p603 = scmp.lt.s32.totalorder %s24, 3
      %p604 = pnand %p602, %p603
      %p605 = pneg %p604
      // Predicated region
      $region85: #{tpu_custom_call.1} parent=5 // pred_check
        _
      $region86: #{tpu_custom_call.1} parent=5 // pred_check_branch
        %607 = sbr.rel (%p604) target = $region88
      $region87: #{tpu_custom_call.1} parent=5 // pred_region
        %s608 = ssub.s32 %s24, 1
        %s609 = smul.u32 2, %s33
        %p610 = scmp.lt.s32.totalorder %s609, 1
        %s611 = scalar_select %p610, %s609, 1
        %s612 = smul.addr %s611, 8
        %s613 = scalar_lea.vmem %s0, %s612
        %p614 = pneg %p62
        %p615 = pneg %p59
        %p616 = scmp.lt.s32.totalorder %s34, 1
        %s617 = scalar_select %p616, %s34, 1
        %s618 = scalar_lea.vmem %s1, %s617
        %p619 = pneg %p88
        %p620 = pneg %p85
        %p621 = scmp.lt.s32.totalorder %s34, 1
        %s622 = scalar_select %p621, %s34, 1
        %s623 = scalar_lea.vmem %s2, %s622
        %p624 = pneg %p114
        %p625 = pneg %p111
        %p626 = scmp.lt.s32.totalorder %s34, 1
        %s627 = scalar_select %p626, %s34, 1
        %s628 = smul.addr %s627, 4
        %s629 = smul.addr %s628, 8
        %s630 = scalar_lea.vmem %s3, %s629
        %p631 = pneg %p140
        %p632 = pneg %p137
        %p633 = scmp.lt.s32.totalorder %s34, 1
        %s634 = scalar_select %p633, %s34, 1
        %s635 = smul.addr %s634, 4
        %s636 = smul.addr %s635, 8
        %s637 = scalar_lea.vmem %s4, %s636
        %p638 = pneg %p166
        %p639 = pneg %p163
        %p640 = scmp.lt.s32.totalorder %s34, 1
        %s641 = scalar_select %p640, %s34, 1
        %s642 = scalar_lea.vmem %s5, %s641
        %p643 = pneg %p192
        %p644 = pneg %p189
        %p645 = scmp.lt.s32.totalorder %s34, 1
        %s646 = scalar_select %p645, %s34, 1
        %s647 = scalar_lea.vmem %s6, %s646
        %p648 = pneg %p218
        %p649 = pneg %p215
        %p650 = scmp.lt.s32.totalorder %s34, 1
        %s651 = scalar_select %p650, %s34, 1
        %s652 = scalar_lea.vmem %s7, %s651
        %p653 = pneg %p244
        %p654 = pneg %p241
        %p655 = scmp.lt.s32.totalorder %s34, 1
        %s656 = scalar_select %p655, %s34, 1
        %s657 = scalar_lea.vmem %s8, %s656
        %p658 = pneg %p270
        %p659 = pneg %p267
        %p660 = scmp.lt.s32.totalorder %s34, 1
        %s661 = scalar_select %p660, %s34, 1
        %s662 = scalar_lea.vmem %s9, %s661
        %p663 = pneg %p296
        %p664 = pneg %p293
        %p665 = scmp.lt.s32.totalorder %s34, 1
        %s666 = scalar_select %p665, %s34, 1
        %s667 = scalar_lea.vmem %s10, %s666
        %p668 = pneg %p322
        %p669 = pneg %p319
        %p670 = scmp.lt.s32.totalorder %s34, 1
        %s671 = scalar_select %p670, %s34, 1
        %s672 = smul.addr %s671, 8
        %s673 = smul.addr %s672, 8
        %s674 = scalar_lea.vmem %s11, %s673
        %p675 = pneg %p348
        %p676 = pneg %p345
        %p677 = scmp.lt.s32.totalorder %s34, 1
        %s678 = scalar_select %p677, %s34, 1
        %s679 = scalar_lea.vmem %s12, %s678
        %p680 = pneg %p374
        %p681 = pneg %p371
        %p682 = pneg %p395
        %p683 = pneg %p392
        %p684 = pneg %p416
        %p685 = pneg %p413
        %p686 = pneg %p437
        %p687 = pneg %p434
        %p688 = pneg %p458
        %p689 = pneg %p455
        %p690 = pneg %p484
        %p691 = pneg %p481
        %s692 = smul.u32 2, %s33
        %p693 = scmp.lt.s32.totalorder %s692, 1
        %s694 = scalar_select %p693, %s692, 1
        %s695 = smul.addr %s694, 8
        %s696 = scalar_lea.vmem %s0, %s695
        %s697 = smul.u32 2, %s33
        %p698 = scmp.lt.s32.totalorder %s34, 1
        %s699 = scalar_select %p698, %s34, 1
        %s700 = scalar_lea.vmem %s1, %s699
        %p701 = scmp.lt.s32.totalorder %s34, 1
        %s702 = scalar_select %p701, %s34, 1
        %s703 = scalar_lea.vmem %s2, %s702
        %p704 = scmp.lt.s32.totalorder %s34, 1
        %s705 = scalar_select %p704, %s34, 1
        %s706 = smul.addr %s705, 4
        %s707 = smul.addr %s706, 8
        %s708 = scalar_lea.vmem %s3, %s707
        %p709 = scmp.lt.s32.totalorder %s34, 1
        %s710 = scalar_select %p709, %s34, 1
        %s711 = smul.addr %s710, 4
        %s712 = smul.addr %s711, 8
        %s713 = scalar_lea.vmem %s4, %s712
        %p714 = scmp.lt.s32.totalorder %s34, 1
        %s715 = scalar_select %p714, %s34, 1
        %s716 = scalar_lea.vmem %s5, %s715
        %p717 = scmp.lt.s32.totalorder %s34, 1
        %s718 = scalar_select %p717, %s34, 1
        %s719 = scalar_lea.vmem %s6, %s718
        %p720 = scmp.lt.s32.totalorder %s34, 1
        %s721 = scalar_select %p720, %s34, 1
        %s722 = scalar_lea.vmem %s7, %s721
        %p723 = scmp.lt.s32.totalorder %s34, 1
        %s724 = scalar_select %p723, %s34, 1
        %s725 = scalar_lea.vmem %s8, %s724
        %p726 = scmp.lt.s32.totalorder %s34, 1
        %s727 = scalar_select %p726, %s34, 1
        %s728 = scalar_lea.vmem %s9, %s727
        %p729 = scmp.lt.s32.totalorder %s34, 1
        %s730 = scalar_select %p729, %s34, 1
        %s731 = scalar_lea.vmem %s10, %s730
        %p732 = scmp.lt.s32.totalorder %s34, 1
        %s733 = scalar_select %p732, %s34, 1
        %s734 = smul.addr %s733, 8
        %s735 = smul.addr %s734, 8
        %s736 = scalar_lea.vmem %s11, %s735
        %p737 = scmp.lt.s32.totalorder %s34, 1
        %s738 = scalar_select %p737, %s34, 1
        %s739 = scalar_lea.vmem %s12, %s738
        %p740 = scmp.eq.s32.totalorder %s34, 0
        // Predicated region
        $region89: #{tpu_custom_call.1} parent=87 // pred_check
          %p741 = pneg %p740
        $region90: #{tpu_custom_call.1} parent=87 // pred_check_branch
          %743 = sbr.rel (%p741) target = $region92
        $region91: #{tpu_custom_call.1} parent=87 // pred_region
          %v744 = vld [vmem:[%s696] sm:$0xff]
          %v745 = vld [vmem:[%s696 + $0x8] sm:$0xff]
          %vm746 = vcmask 261120
          %747 = vst.msk [vmem:[#allocation2] sm:$0xff] %vm746, %v744
          %748 = vst.msk [vmem:[#allocation2 + $0x8] sm:$0xff] %vm746, %v745
        $region92: #{tpu_custom_call.1} parent=87 // pred_fallthru
          _
        %v749 = vld [vmem:[#allocation2] sm:$0xff]
        %v750 = vld [vmem:[#allocation2 + $0x8] sm:$0xff]
        %v751 = vld [vmem:[%s700] sm:$0x1]
        %v752 = vld [vmem:[%s703] sm:$0x1]
        %vm753 = vcmask 261120
        %v754 = vsel %vm753, %v749, 0.0
        %755 = vadd.xlane.f32.xlu0 %v754
        %v756 = vpop.xlane.xlu0 %755
        %v757 = vsel %vm753, %v750, 0.0
        %758 = vadd.xlane.f32.xlu0 %v757
        %v759 = vpop.xlane.xlu0 %758
        %v760 = vrcp.pop 32.0
        %v761 = vmul.f32 %v756, %v760
        %v762 = vmul.f32 %v759, %v760
        %v763 = vsub.f32 %v749, %v761
        %v764 = vsub.f32 %v750, %v762
        %v765 = vmul.f32 %v763, %v763
        %v766 = vmul.f32 %v764, %v764
        %v767 = vsel %vm753, %v765, 0.0
        %768 = vadd.xlane.f32.xlu0 %v767
        %v769 = vpop.xlane.xlu0 %768
        %v770 = vsel %vm753, %v766, 0.0
        %771 = vadd.xlane.f32.xlu0 %v770
        %v772 = vpop.xlane.xlu0 %771
        %v773 = vmul.f32 %v769, %v760
        %v774 = vmul.f32 %v772, %v760
        %v775 = vadd.f32 %v773, 1e-05
        %v776 = vadd.f32 %v774, 1e-05
        %v777 = vrsqrt.pop %v775
        %v778 = vrsqrt.pop %v776
        %v779 = vmul.f32 %v763, %v777
        %v780 = vmul.f32 %v764, %v778
        %v782 = vlaneseq
        %v783 = vshrl.u32 %v782, 7
        %v784 = vsub.s32 0, %v783
        %v785 = vrot.slane %v751, %v784
        %v787 = vmul.f32 %v779, %v785
        %v788 = vmul.f32 %v780, %v785
        %v790 = vlaneseq
        %v791 = vshrl.u32 %v790, 7
        %v792 = vsub.s32 0, %v791
        %v793 = vrot.slane %v752, %v792
        %v795 = vadd.f32 %v787, %v793
        %v796 = vadd.f32 %v788, %v793
        %v797 = vld [vmem:[%s708] sm:$0xff]
        %v798 = vld [vmem:[%s708 + $0x8] sm:$0xff]
        %v799 = vld [vmem:[%s708 + $0x10] sm:$0xff]
        %v800 = vld [vmem:[%s708 + $0x18] sm:$0xff]
        %v801 = vld [vmem:[%s716] sm:$0x1]
        %v803 = vlaneseq
        %v804 = vshrl.u32 %v803, 7
        %v805 = vsub.s32 0, %v804
        %v806 = vrot.slane %v801, %v805
        %v809 = vsel %vm753, %v795, 0
        %v812 = vsel %vm753, %v796, 0
        %814 = vmatprep.subr.mxu0 0.0
        %815 = vmatpush1.msra.mxu0 %v797
        %816 = vmatprep.subr.mxu0 0.0
        %817 = vmatpush1.msra.mxu0 %v798
        %818 = vmatprep.subr.mxu0 0.0
        %819 = vmatpush1.msra.mxu0 %v799
        %820 = vmatprep.subr.mxu0 0.0
        %821 = vmatpush1.msra.mxu0 %v800
        %822 = vmatprep.subr.mxu0 0.0
        %823 = vmatpush1.msra.mxu0 0.0
        %824 = vmatprep.subr.mxu0 0.0
        %825 = vmatpush1.msra.mxu0 0.0
        %826 = vmatprep.subr.mxu0 0.0
        %827 = vmatpush1.msra.mxu0 0.0
        %828 = vmatprep.subr.mxu0 0.0
        %829 = vmatpush1.msra.mxu0 0.0
        %830 = vmatprep.subr.mxu0 0.0
        %831 = vmatpush1.msra.mxu0 0.0
        %832 = vmatprep.subr.mxu0 0.0
        %833 = vmatpush1.msra.mxu0 0.0
        %834 = vmatprep.subr.mxu0 0.0
        %835 = vmatpush1.msra.mxu0 0.0
        %836 = vmatprep.subr.mxu0 0.0
        %837 = vmatpush1.msra.mxu0 0.0
        %838 = vmatprep.subr.mxu0 0.0
        %839 = vmatpush1.msra.mxu0 0.0
        %840 = vmatprep.subr.mxu0 0.0
        %841 = vmatpush1.msra.mxu0 0.0
        %842 = vmatprep.subr.mxu0 0.0
        %843 = vmatpush1.msra.mxu0 0.0
        %844 = vmatprep.subr.mxu0 0.0
        %845 = vmatpush1.msra.mxu0 0.0
        %846 = vmatprep.subr.mxu0 0.0
        %847 = vmatpush1.msra.mxu0 0.0
        %848 = vmatprep.subr.mxu0 0.0
        %849 = vmatpush1.msra.mxu0 0.0
        %850 = vmatprep.subr.mxu0 0.0
        %851 = vmatpush1.msra.mxu0 0.0
        %852 = vmatprep.subr.mxu0 0.0
        %853 = vmatpush1.msra.mxu0 0.0
        %854 = vmatprep.subr.mxu0 0.0
        %855 = vmatpush1.msra.mxu0 0.0
        %856 = vmatprep.subr.mxu0 0.0
        %857 = vmatpush1.msra.mxu0 0.0
        %858 = vmatprep.subr.mxu0 0.0
        %859 = vmatpush1.msra.mxu0 0.0
        %860 = vmatprep.subr.mxu0 0.0
        %861 = vmatpush1.msra.mxu0 0.0
        %862 = vmatprep.subr.mxu0 0.0
        %863 = vmatpush1.msra.mxu0 0.0
        %864 = vmatprep.subr.mxu0 0.0
        %865 = vmatpush1.msra.mxu0 0.0
        %866 = vmatprep.subr.mxu0 0.0
        %867 = vmatpush1.msra.mxu0 0.0
        %868 = vmatprep.subr.mxu0 0.0
        %869 = vmatpush1.msra.mxu0 0.0
        %870 = vmatprep.subr.mxu0 0.0
        %871 = vmatpush1.msra.mxu0 0.0
        %872 = vmatprep.subr.mxu0 0.0
        %873 = vmatpush1.msra.mxu0 0.0
        %874 = vmatprep.subr.mxu0 0.0
        %875 = vmatpush1.msra.mxu0 0.0
        %876 = vmatprep.subr.mxu0 0.0
        %877 = vmatpush1.msra.mxu0 0.0
        %878 = vmatprep.mubr.f32.mxu0 0.0
        %879 = vmatmul.mubr.f32.gmra.mrb[0].mxu0 %v809
        %v880 = vpop.f32.mrb[0].mxu0
        %v881 = vadd.f32 %v806, %v880
        %v882 = vpop.f32.mrb[0].mxu0
        %883 = vmatprep.mubr.f32.mxu0 0.0
        %884 = vmatmul.mubr.f32.gmra.mrb[0].mxu0 %v812
        %v885 = vpop.f32.mrb[0].mxu0
        %v886 = vadd.f32 %v806, %v885
        %v887 = vpop.f32.mrb[0].mxu0
        %888 = vdwg.mxu0
        %v889 = vld [vmem:[%s713] sm:$0xff]
        %v890 = vld [vmem:[%s713 + $0x8] sm:$0xff]
        %v891 = vld [vmem:[%s713 + $0x10] sm:$0xff]
        %v892 = vld [vmem:[%s713 + $0x18] sm:$0xff]
        %v893 = vld [vmem:[%s719] sm:$0x1]
        %v895 = vlaneseq
        %v896 = vshrl.u32 %v895, 7
        %v897 = vsub.s32 0, %v896
        %v898 = vrot.slane %v893, %v897
        %900 = vmatprep.subr.mxu0 0.0
        %901 = vmatpush1.msra.mxu0 %v889
        %902 = vmatprep.subr.mxu0 0.0
        %903 = vmatpush1.msra.mxu0 %v890
        %904 = vmatprep.subr.mxu0 0.0
        %905 = vmatpush1.msra.mxu0 %v891
        %906 = vmatprep.subr.mxu0 0.0
        %907 = vmatpush1.msra.mxu0 %v892
        %908 = vmatprep.subr.mxu0 0.0
        %909 = vmatpush1.msra.mxu0 0.0
        %910 = vmatprep.subr.mxu0 0.0
        %911 = vmatpush1.msra.mxu0 0.0
        %912 = vmatprep.subr.mxu0 0.0
        %913 = vmatpush1.msra.mxu0 0.0
        %914 = vmatprep.subr.mxu0 0.0
        %915 = vmatpush1.msra.mxu0 0.0
        %916 = vmatprep.subr.mxu0 0.0
        %917 = vmatpush1.msra.mxu0 0.0
        %918 = vmatprep.subr.mxu0 0.0
        %919 = vmatpush1.msra.mxu0 0.0
        %920 = vmatprep.subr.mxu0 0.0
        %921 = vmatpush1.msra.mxu0 0.0
        %922 = vmatprep.subr.mxu0 0.0
        %923 = vmatpush1.msra.mxu0 0.0
        %924 = vmatprep.subr.mxu0 0.0
        %925 = vmatpush1.msra.mxu0 0.0
        %926 = vmatprep.subr.mxu0 0.0
        %927 = vmatpush1.msra.mxu0 0.0
        %928 = vmatprep.subr.mxu0 0.0
        %929 = vmatpush1.msra.mxu0 0.0
        %930 = vmatprep.subr.mxu0 0.0
        %931 = vmatpush1.msra.mxu0 0.0
        %932 = vmatprep.subr.mxu0 0.0
        %933 = vmatpush1.msra.mxu0 0.0
        %934 = vmatprep.subr.mxu0 0.0
        %935 = vmatpush1.msra.mxu0 0.0
        %936 = vmatprep.subr.mxu0 0.0
        %937 = vmatpush1.msra.mxu0 0.0
        %938 = vmatprep.subr.mxu0 0.0
        %939 = vmatpush1.msra.mxu0 0.0
        %940 = vmatprep.subr.mxu0 0.0
        %941 = vmatpush1.msra.mxu0 0.0
        %942 = vmatprep.subr.mxu0 0.0
        %943 = vmatpush1.msra.mxu0 0.0
        %944 = vmatprep.subr.mxu0 0.0
        %945 = vmatpush1.msra.mxu0 0.0
        %946 = vmatprep.subr.mxu0 0.0
        %947 = vmatpush1.msra.mxu0 0.0
        %948 = vmatprep.subr.mxu0 0.0
        %949 = vmatpush1.msra.mxu0 0.0
        %950 = vmatprep.subr.mxu0 0.0
        %951 = vmatpush1.msra.mxu0 0.0
        %952 = vmatprep.subr.mxu0 0.0
        %953 = vmatpush1.msra.mxu0 0.0
        %954 = vmatprep.subr.mxu0 0.0
        %955 = vmatpush1.msra.mxu0 0.0
        %956 = vmatprep.subr.mxu0 0.0
        %957 = vmatpush1.msra.mxu0 0.0
        %958 = vmatprep.subr.mxu0 0.0
        %959 = vmatpush1.msra.mxu0 0.0
        %960 = vmatprep.subr.mxu0 0.0
        %961 = vmatpush1.msra.mxu0 0.0
        %962 = vmatprep.subr.mxu0 0.0
        %963 = vmatpush1.msra.mxu0 0.0
        %964 = vmatprep.mubr.f32.mxu0 0.0
        %965 = vmatmul.mubr.f32.gmra.mrb[0].mxu0 %v809
        %v966 = vpop.f32.mrb[0].mxu0
        %v967 = vadd.f32 %v898, %v966
        %v968 = vpop.f32.mrb[0].mxu0
        %969 = vmatprep.mubr.f32.mxu0 0.0
        %970 = vmatmul.mubr.f32.gmra.mrb[0].mxu0 %v812
        %v971 = vpop.f32.mrb[0].mxu0
        %v972 = vadd.f32 %v898, %v971
        %v973 = vpop.f32.mrb[0].mxu0
        %974 = vdwg.mxu0
        %v975 = vmul.f32 %v881, 0.5
        %v976 = vmul.f32 %v886, 0.5
        %v977 = vmul.f32 %v881, 0.70710677
        %v978 = vmul.f32 %v886, 0.70710677
        %vm979 = vcmp.ge.f32.partialorder %v977, 0.0
        %vm980 = vcmp.ge.f32.partialorder %v978, 0.0
        %v981 = vsel %vm979, 1.0, -1.0
        %v982 = vsel %vm980, 1.0, -1.0
        %v983 = vand.u32 2147483647, %v977
        %v984 = vand.u32 2147483647, %v978
        %v985 = vmul.f32 %v983, 0.3275911
        %v986 = vmul.f32 %v984, 0.3275911
        %v987 = vadd.f32 %v985, 1.0
        %v988 = vadd.f32 %v986, 1.0
        %v989 = vrcp.pop %v987
        %v990 = vmul.f32 1.0, %v989
        %v991 = vrcp.pop %v988
        %v992 = vmul.f32 1.0, %v991
        %v993 = vmul.f32 %v990, 1.0614054
        %v994 = vmul.f32 %v992, 1.0614054
        %v995 = vadd.f32 %v993, -1.4531521
        %v996 = vadd.f32 %v994, -1.4531521
        %v997 = vmul.f32 %v995, %v990
        %v998 = vmul.f32 %v996, %v992
        %v999 = vadd.f32 %v997, 1.4214138
        %v1000 = vadd.f32 %v998, 1.4214138
        %v1001 = vmul.f32 %v999, %v990
        %v1002 = vmul.f32 %v1000, %v992
        %v1003 = vadd.f32 %v1001, -0.28449672
        %v1004 = vadd.f32 %v1002, -0.28449672
        %v1005 = vmul.f32 %v1003, %v990
        %v1006 = vmul.f32 %v1004, %v992
        %v1007 = vadd.f32 %v1005, 0.2548296
        %v1008 = vadd.f32 %v1006, 0.2548296
        %v1009 = vmul.f32 %v1007, %v990
        %v1010 = vmul.f32 %v1008, %v992
        %v1011 = vsub.f32 0.0, %v983
        %v1012 = vsub.f32 0.0, %v984
        %v1013 = vmul.f32 %v1011, %v983
        %v1014 = vmul.f32 %v1012, %v984
        %v1015 = vmul.f32 %v1013, 1.442695
        %v1016 = vpow.pop %v1015
        %v1017 = vmul.f32 %v1014, 1.442695
        %v1018 = vpow.pop %v1017
        %v1019 = vmul.f32 %v1009, %v1016
        %v1020 = vmul.f32 %v1010, %v1018
        %v1021 = vsub.f32 1.0, %v1019
        %v1022 = vsub.f32 1.0, %v1020
        %v1023 = vmul.f32 %v981, %v1021
        %v1024 = vmul.f32 %v982, %v1022
        %v1025 = vadd.f32 %v1023, 1.0
        %v1026 = vadd.f32 %v1024, 1.0
        %v1027 = vmul.f32 %v975, %v1025
        %v1028 = vmul.f32 %v976, %v1026
        %v1029 = vmul.f32 %v967, 0.5
        %v1030 = vmul.f32 %v972, 0.5
        %v1031 = vmul.f32 %v967, 0.70710677
        %v1032 = vmul.f32 %v972, 0.70710677
        %vm1033 = vcmp.ge.f32.partialorder %v1031, 0.0
        %vm1034 = vcmp.ge.f32.partialorder %v1032, 0.0
        %v1035 = vsel %vm1033, 1.0, -1.0
        %v1036 = vsel %vm1034, 1.0, -1.0
        %v1037 = vand.u32 2147483647, %v1031
        %v1038 = vand.u32 2147483647, %v1032
        %v1039 = vmul.f32 %v1037, 0.3275911
        %v1040 = vmul.f32 %v1038, 0.3275911
        %v1041 = vadd.f32 %v1039, 1.0
        %v1042 = vadd.f32 %v1040, 1.0
        %v1043 = vrcp.pop %v1041
        %v1044 = vmul.f32 1.0, %v1043
        %v1045 = vrcp.pop %v1042
        %v1046 = vmul.f32 1.0, %v1045
        %v1047 = vmul.f32 %v1044, 1.0614054
        %v1048 = vmul.f32 %v1046, 1.0614054
        %v1049 = vadd.f32 %v1047, -1.4531521
        %v1050 = vadd.f32 %v1048, -1.4531521
        %v1051 = vmul.f32 %v1049, %v1044
        %v1052 = vmul.f32 %v1050, %v1046
        %v1053 = vadd.f32 %v1051, 1.4214138
        %v1054 = vadd.f32 %v1052, 1.4214138
        %v1055 = vmul.f32 %v1053, %v1044
        %v1056 = vmul.f32 %v1054, %v1046
        %v1057 = vadd.f32 %v1055, -0.28449672
        %v1058 = vadd.f32 %v1056, -0.28449672
        %v1059 = vmul.f32 %v1057, %v1044
        %v1060 = vmul.f32 %v1058, %v1046
        %v1061 = vadd.f32 %v1059, 0.2548296
        %v1062 = vadd.f32 %v1060, 0.2548296
        %v1063 = vmul.f32 %v1061, %v1044
        %v1064 = vmul.f32 %v1062, %v1046
        %v1065 = vsub.f32 0.0, %v1037
        %v1066 = vsub.f32 0.0, %v1038
        %v1067 = vmul.f32 %v1065, %v1037
        %v1068 = vmul.f32 %v1066, %v1038
        %v1069 = vmul.f32 %v1067, 1.442695
        %v1070 = vpow.pop %v1069
        %v1071 = vmul.f32 %v1068, 1.442695
        %v1072 = vpow.pop %v1071
        %v1073 = vmul.f32 %v1063, %v1070
        %v1074 = vmul.f32 %v1064, %v1072
        %v1075 = vsub.f32 1.0, %v1073
        %v1076 = vsub.f32 1.0, %v1074
        %v1077 = vmul.f32 %v1035, %v1075
        %v1078 = vmul.f32 %v1036, %v1076
        %v1079 = vadd.f32 %v1077, 1.0
        %v1080 = vadd.f32 %v1078, 1.0
        %v1081 = vmul.f32 %v1029, %v1079
        %v1082 = vmul.f32 %v1030, %v1080
        %v1083 = vld [vmem:[%s722] sm:$0x1]
        %v1084 = vld [vmem:[%s725] sm:$0x1]
        %vm1085 = vcmask 523264
        %v1086 = vsel %vm1085, %v1081, 0.0
        %1087 = vadd.xlane.f32.xlu0 %v1086
        %v1088 = vpop.xlane.xlu0 %1087
        %v1089 = vsel %vm1085, %v1082, 0.0
        %1090 = vadd.xlane.f32.xlu0 %v1089
        %v1091 = vpop.xlane.xlu0 %1090
        %v1092 = vrcp.pop 64.0
        %v1093 = vmul.f32 %v1088, %v1092
        %v1094 = vmul.f32 %v1091, %v1092
        %v1095 = vsub.f32 %v1081, %v1093
        %v1096 = vsub.f32 %v1082, %v1094
        %v1097 = vmul.f32 %v1095, %v1095
        %v1098 = vmul.f32 %v1096, %v1096
        %v1099 = vsel %vm1085, %v1097, 0.0
        %1100 = vadd.xlane.f32.xlu0 %v1099
        %v1101 = vpop.xlane.xlu0 %1100
        %v1102 = vsel %vm1085, %v1098, 0.0
        %1103 = vadd.xlane.f32.xlu0 %v1102
        %v1104 = vpop.xlane.xlu0 %1103
        %v1105 = vmul.f32 %v1101, %v1092
        %v1106 = vmul.f32 %v1104, %v1092
        %v1107 = vadd.f32 %v1105, 1e-05
        %v1108 = vadd.f32 %v1106, 1e-05
        %v1109 = vrsqrt.pop %v1107
        %v1110 = vrsqrt.pop %v1108
        %v1111 = vmul.f32 %v1095, %v1109
        %v1112 = vmul.f32 %v1096, %v1110
        %v1114 = vlaneseq
        %v1115 = vshrl.u32 %v1114, 7
        %v1116 = vsub.s32 0, %v1115
        %v1117 = vrot.slane %v1083, %v1116
        %v1119 = vmul.f32 %v1111, %v1117
        %v1120 = vmul.f32 %v1112, %v1117
        %v1122 = vlaneseq
        %v1123 = vshrl.u32 %v1122, 7
        %v1124 = vsub.s32 0, %v1123
        %v1125 = vrot.slane %v1084, %v1124
        %v1127 = vadd.f32 %v1119, %v1125
        %v1128 = vadd.f32 %v1120, %v1125
        %v1129 = vsel %vm1085, %v1127, 0.0
        %v1130 = vrot.slane %v1129, 4
        %v1131 = vadd.f32 %v1129, %v1130
        %v1132 = vrot.slane %v1131, 2
        %v1133 = vadd.f32 %v1131, %v1132
        %v1134 = vrot.slane %v1133, 1
        %v1135 = vadd.f32 %v1133, %v1134
        %v1136 = vsel %vm1085, %v1128, 0.0
        %v1137 = vrot.slane %v1136, 4
        %v1138 = vadd.f32 %v1136, %v1137
        %v1139 = vrot.slane %v1138, 2
        %v1140 = vadd.f32 %v1138, %v1139
        %v1141 = vrot.slane %v1140, 1
        %v1142 = vadd.f32 %v1140, %v1141
        %v1143 = vld [vmem:[%s728] sm:$0x1]
        %v1145 = vlaneseq
        %v1146 = vshrl.u32 %v1145, 7
        %v1147 = vsub.s32 0, %v1146
        %v1148 = vrot.slane %v1143, %v1147
        %v1150 = vmul.f32 %v1135, %v1148
        %v1151 = vmul.f32 %v1142, %v1148
        %v1152 = vld [vmem:[%s731] sm:$0x1]
        %v1154 = vlaneseq
        %v1155 = vshrl.u32 %v1154, 7
        %v1156 = vsub.s32 0, %v1155
        %v1157 = vrot.slane %v1152, %v1156
        %v1159 = vadd.f32 %v1150, %v1157
        %v1160 = vadd.f32 %v1151, %v1157
        %v1161 = vlaneseq
        %v1162 = vshrl.u32 %v1161, 7
        %v1163 = vsub.s32 0, %v1162
        %v1164 = vrot.slane %v1159, %v1163
        %v1165 = vlaneseq
        %v1166 = vshrl.u32 %v1165, 7
        %v1167 = vsub.s32 0, %v1166
        %v1168 = vrot.slane %v1160, %v1167
        %v1169 = vmul.f32 %v1164, %v1027
        %v1170 = vmul.f32 %v1168, %v1028
        %v1171 = vld [vmem:[%s736] sm:$0xff]
        %v1172 = vld [vmem:[%s736 + $0x8] sm:$0xff]
        %v1173 = vld [vmem:[%s736 + $0x10] sm:$0xff]
        %v1174 = vld [vmem:[%s736 + $0x18] sm:$0xff]
        %v1175 = vld [vmem:[%s736 + $0x20] sm:$0xff]
        %v1176 = vld [vmem:[%s736 + $0x28] sm:$0xff]
        %v1177 = vld [vmem:[%s736 + $0x30] sm:$0xff]
        %v1178 = vld [vmem:[%s736 + $0x38] sm:$0xff]
        %v1179 = vld [vmem:[%s739] sm:$0x1]
        %v1181 = vlaneseq
        %v1182 = vshrl.u32 %v1181, 7
        %v1183 = vsub.s32 0, %v1182
        %v1184 = vrot.slane %v1179, %v1183
        %v1187 = vsel %vm1085, %v1169, 0
        %v1190 = vsel %vm1085, %v1170, 0
        %1192 = vmatprep.subr.mxu0 0.0
        %1193 = vmatpush1.msra.mxu0 %v1171
        %1194 = vmatprep.subr.mxu0 0.0
        %1195 = vmatpush1.msra.mxu0 %v1172
        %1196 = vmatprep.subr.mxu0 0.0
        %1197 = vmatpush1.msra.mxu0 %v1173
        %1198 = vmatprep.subr.mxu0 0.0
        %1199 = vmatpush1.msra.mxu0 %v1174
        %1200 = vmatprep.subr.mxu0 0.0
        %1201 = vmatpush1.msra.mxu0 %v1175
        %1202 = vmatprep.subr.mxu0 0.0
        %1203 = vmatpush1.msra.mxu0 %v1176
        %1204 = vmatprep.subr.mxu0 0.0
        %1205 = vmatpush1.msra.mxu0 %v1177
        %1206 = vmatprep.subr.mxu0 0.0
        %1207 = vmatpush1.msra.mxu0 %v1178
        %1208 = vmatprep.subr.mxu0 0.0
        %1209 = vmatpush1.msra.mxu0 0.0
        %1210 = vmatprep.subr.mxu0 0.0
        %1211 = vmatpush1.msra.mxu0 0.0
        %1212 = vmatprep.subr.mxu0 0.0
        %1213 = vmatpush1.msra.mxu0 0.0
        %1214 = vmatprep.subr.mxu0 0.0
        %1215 = vmatpush1.msra.mxu0 0.0
        %1216 = vmatprep.subr.mxu0 0.0
        %1217 = vmatpush1.msra.mxu0 0.0
        %1218 = vmatprep.subr.mxu0 0.0
        %1219 = vmatpush1.msra.mxu0 0.0
        %1220 = vmatprep.subr.mxu0 0.0
        %1221 = vmatpush1.msra.mxu0 0.0
        %1222 = vmatprep.subr.mxu0 0.0
        %1223 = vmatpush1.msra.mxu0 0.0
        %1224 = vmatprep.subr.mxu0 0.0
        %1225 = vmatpush1.msra.mxu0 0.0
        %1226 = vmatprep.subr.mxu0 0.0
        %1227 = vmatpush1.msra.mxu0 0.0
        %1228 = vmatprep.subr.mxu0 0.0
        %1229 = vmatpush1.msra.mxu0 0.0
        %1230 = vmatprep.subr.mxu0 0.0
        %1231 = vmatpush1.msra.mxu0 0.0
        %1232 = vmatprep.subr.mxu0 0.0
        %1233 = vmatpush1.msra.mxu0 0.0
        %1234 = vmatprep.subr.mxu0 0.0
        %1235 = vmatpush1.msra.mxu0 0.0
        %1236 = vmatprep.subr.mxu0 0.0
        %1237 = vmatpush1.msra.mxu0 0.0
        %1238 = vmatprep.subr.mxu0 0.0
        %1239 = vmatpush1.msra.mxu0 0.0
        %1240 = vmatprep.subr.mxu0 0.0
        %1241 = vmatpush1.msra.mxu0 0.0
        %1242 = vmatprep.subr.mxu0 0.0
        %1243 = vmatpush1.msra.mxu0 0.0
        %1244 = vmatprep.subr.mxu0 0.0
        %1245 = vmatpush1.msra.mxu0 0.0
        %1246 = vmatprep.subr.mxu0 0.0
        %1247 = vmatpush1.msra.mxu0 0.0
        %1248 = vmatprep.subr.mxu0 0.0
        %1249 = vmatpush1.msra.mxu0 0.0
        %1250 = vmatprep.subr.mxu0 0.0
        %1251 = vmatpush1.msra.mxu0 0.0
        %1252 = vmatprep.subr.mxu0 0.0
        %1253 = vmatpush1.msra.mxu0 0.0
        %1254 = vmatprep.subr.mxu0 0.0
        %1255 = vmatpush1.msra.mxu0 0.0
        %1256 = vmatprep.mubr.f32.mxu0 0.0
        %1257 = vmatmul.mubr.f32.gmra.mrb[0].mxu0 %v1187
        %v1258 = vpop.f32.mrb[0].mxu0
        %v1259 = vadd.f32 %v1184, %v1258
        %v1260 = vpop.f32.mrb[0].mxu0
        %1261 = vmatprep.mubr.f32.mxu0 0.0
        %1262 = vmatmul.mubr.f32.gmra.mrb[0].mxu0 %v1190
        %v1263 = vpop.f32.mrb[0].mxu0
        %v1264 = vadd.f32 %v1184, %v1263
        %v1265 = vpop.f32.mrb[0].mxu0
        %1266 = vdwg.mxu0
        %v1267 = vadd.f32 %v749, %v1259
        %v1268 = vadd.f32 %v750, %v1264
        %1269 = vst.msk [vmem:[#allocation2] sm:$0xff] %vm753, %v1267
        %1270 = vst.msk [vmem:[#allocation2 + $0x8] sm:$0xff] %vm753, %v1268
        %p1271 = scmp.eq.s32.totalorder %s34, 1
        // Predicated region
        $region93: #{tpu_custom_call.1} parent=87 // pred_check
          %p1272 = pneg %p1271
        $region94: #{tpu_custom_call.1} parent=87 // pred_check_branch
          %1274 = sbr.rel (%p1272) target = $region96
        $region95: #{tpu_custom_call.1} parent=87 // pred_region
          %v1275 = vld [vmem:[#allocation2] sm:$0xff]
          %v1276 = vld [vmem:[#allocation2 + $0x8] sm:$0xff]
          %v1277 = vld [vmem:[%s13] sm:$0x1]
          %v1278 = vld [vmem:[%s14] sm:$0x1]
          %v1279 = vsel %vm753, %v1275, 0.0
          %1280 = vadd.xlane.f32.xlu0 %v1279
          %v1281 = vpop.xlane.xlu0 %1280
          %v1282 = vsel %vm753, %v1276, 0.0
          %1283 = vadd.xlane.f32.xlu0 %v1282
          %v1284 = vpop.xlane.xlu0 %1283
          %v1285 = vmul.f32 %v1281, %v760
          %v1286 = vmul.f32 %v1284, %v760
          %v1287 = vsub.f32 %v1275, %v1285
          %v1288 = vsub.f32 %v1276, %v1286
          %v1289 = vmul.f32 %v1287, %v1287
          %v1290 = vmul.f32 %v1288, %v1288
          %v1291 = vsel %vm753, %v1289, 0.0
          %1292 = vadd.xlane.f32.xlu0 %v1291
          %v1293 = vpop.xlane.xlu0 %1292
          %v1294 = vsel %vm753, %v1290, 0.0
          %1295 = vadd.xlane.f32.xlu0 %v1294
          %v1296 = vpop.xlane.xlu0 %1295
          %v1297 = vmul.f32 %v1293, %v760
          %v1298 = vmul.f32 %v1296, %v760
          %v1299 = vadd.f32 %v1297, 1e-05
          %v1300 = vadd.f32 %v1298, 1e-05
          %v1301 = vrsqrt.pop %v1299
          %v1302 = vrsqrt.pop %v1300
          %v1303 = vmul.f32 %v1287, %v1301
          %v1304 = vmul.f32 %v1288, %v1302
          %v1306 = vlaneseq
          %v1307 = vshrl.u32 %v1306, 7
          %v1308 = vsub.s32 0, %v1307
          %v1309 = vrot.slane %v1277, %v1308
          %v1311 = vmul.f32 %v1303, %v1309
          %v1312 = vmul.f32 %v1304, %v1309
          %v1314 = vlaneseq
          %v1315 = vshrl.u32 %v1314, 7
          %v1316 = vsub.s32 0, %v1315
          %v1317 = vrot.slane %v1278, %v1316
          %v1319 = vadd.f32 %v1311, %v1317
          %v1320 = vadd.f32 %v1312, %v1317
          %v1321 = vsel %vm753, %v1319, 0.0
          %v1322 = vrot.slane %v1321, 4
          %v1323 = vadd.f32 %v1321, %v1322
          %v1324 = vrot.slane %v1323, 2
          %v1325 = vadd.f32 %v1323, %v1324
          %v1326 = vrot.slane %v1325, 1
          %v1327 = vadd.f32 %v1325, %v1326
          %v1328 = vsel %vm753, %v1320, 0.0
          %v1329 = vrot.slane %v1328, 4
          %v1330 = vadd.f32 %v1328, %v1329
          %v1331 = vrot.slane %v1330, 2
          %v1332 = vadd.f32 %v1330, %v1331
          %v1333 = vrot.slane %v1332, 1
          %v1334 = vadd.f32 %v1332, %v1333
          %v1335 = vmul.f32 %v1327, 0.125
          %v1336 = vmul.f32 %v1334, 0.125
          %v1337 = vld [vmem:[%s15] sm:$0xff]
          %v1338 = vld [vmem:[%s15 + $0x8] sm:$0xff]
          %v1339 = vld [vmem:[%s15 + $0x10] sm:$0xff]
          %v1340 = vld [vmem:[%s15 + $0x18] sm:$0xff]
          %v1341 = vld [vmem:[%s16] sm:$0x1]
          %v1343 = vlaneseq
          %v1344 = vshrl.u32 %v1343, 7
          %v1345 = vsub.s32 0, %v1344
          %v1346 = vrot.slane %v1341, %v1345
          %vm1350 = vcmask 1041409
          %v1351 = vsel %vm1350, %v1336, %v1335
          %v1352 = vsel %vm753, %v1351, 0
          %1354 = vmatprep.subr.mxu0 0.0
          %1355 = vmatpush1.msra.mxu0 %v1337
          %1356 = vmatprep.subr.mxu0 0.0
          %1357 = vmatpush1.msra.mxu0 %v1338
          %1358 = vmatprep.subr.mxu0 0.0
          %1359 = vmatpush1.msra.mxu0 %v1339
          %1360 = vmatprep.subr.mxu0 0.0
          %1361 = vmatpush1.msra.mxu0 %v1340
          %1362 = vmatprep.subr.mxu0 0.0
          %1363 = vmatpush1.msra.mxu0 0.0
          %1364 = vmatprep.subr.mxu0 0.0
          %1365 = vmatpush1.msra.mxu0 0.0
          %1366 = vmatprep.subr.mxu0 0.0
          %1367 = vmatpush1.msra.mxu0 0.0
          %1368 = vmatprep.subr.mxu0 0.0
          %1369 = vmatpush1.msra.mxu0 0.0
          %1370 = vmatprep.subr.mxu0 0.0
          %1371 = vmatpush1.msra.mxu0 0.0
          %1372 = vmatprep.subr.mxu0 0.0
          %1373 = vmatpush1.msra.mxu0 0.0
          %1374 = vmatprep.subr.mxu0 0.0
          %1375 = vmatpush1.msra.mxu0 0.0
          %1376 = vmatprep.subr.mxu0 0.0
          %1377 = vmatpush1.msra.mxu0 0.0
          %1378 = vmatprep.subr.mxu0 0.0
          %1379 = vmatpush1.msra.mxu0 0.0
          %1380 = vmatprep.subr.mxu0 0.0
          %1381 = vmatpush1.msra.mxu0 0.0
          %1382 = vmatprep.subr.mxu0 0.0
          %1383 = vmatpush1.msra.mxu0 0.0
          %1384 = vmatprep.subr.mxu0 0.0
          %1385 = vmatpush1.msra.mxu0 0.0
          %1386 = vmatprep.subr.mxu0 0.0
          %1387 = vmatpush1.msra.mxu0 0.0
          %1388 = vmatprep.subr.mxu0 0.0
          %1389 = vmatpush1.msra.mxu0 0.0
          %1390 = vmatprep.subr.mxu0 0.0
          %1391 = vmatpush1.msra.mxu0 0.0
          %1392 = vmatprep.subr.mxu0 0.0
          %1393 = vmatpush1.msra.mxu0 0.0
          %1394 = vmatprep.subr.mxu0 0.0
          %1395 = vmatpush1.msra.mxu0 0.0
          %1396 = vmatprep.subr.mxu0 0.0
          %1397 = vmatpush1.msra.mxu0 0.0
          %1398 = vmatprep.subr.mxu0 0.0
          %1399 = vmatpush1.msra.mxu0 0.0
          %1400 = vmatprep.subr.mxu0 0.0
          %1401 = vmatpush1.msra.mxu0 0.0
          %1402 = vmatprep.subr.mxu0 0.0
          %1403 = vmatpush1.msra.mxu0 0.0
          %1404 = vmatprep.subr.mxu0 0.0
          %1405 = vmatpush1.msra.mxu0 0.0
          %1406 = vmatprep.subr.mxu0 0.0
          %1407 = vmatpush1.msra.mxu0 0.0
          %1408 = vmatprep.subr.mxu0 0.0
          %1409 = vmatpush1.msra.mxu0 0.0
          %1410 = vmatprep.subr.mxu0 0.0
          %1411 = vmatpush1.msra.mxu0 0.0
          %1412 = vmatprep.subr.mxu0 0.0
          %1413 = vmatpush1.msra.mxu0 0.0
          %1414 = vmatprep.subr.mxu0 0.0
          %1415 = vmatpush1.msra.mxu0 0.0
          %1416 = vmatprep.subr.mxu0 0.0
          %1417 = vmatpush1.msra.mxu0 0.0
          %1418 = vmatprep.mubr.f32.mxu0 0.0
          %1419 = vmatmul.mubr.f32.gmra.mrb[0].mxu0 %v1352
          %v1420 = vpop.f32.mrb[0].mxu0
          %v1421 = vadd.f32 %v1346, %v1420
          %v1422 = vpop.f32.mrb[0].mxu0
          %1423 = vdwg.mxu0
          %vm1424 = vcmask 17408
          %1425 = vst.msk [vmem:[#allocation3] sm:$0x3] %vm1424, %v1421
        $region96: #{tpu_custom_call.1} parent=87 // pred_fallthru
          _
        // Predicated region
        $region97: #{tpu_custom_call.1} parent=87 // pred_check
          %p1426 = pneg %p481
        $region98: #{tpu_custom_call.1} parent=87 // pred_check_branch
          %1428 = sbr.rel (%p1426) target = $region100
        $region99: #{tpu_custom_call.1} parent=87 // pred_region
          %s1430 = ssub.s32 32, 32
          %1431 = vsyncadd [#allocation4], %s1430
          %s1432 = smul.addr %s33, 32
          %s1433 = scalar_lea.hbm %s17, %s1432
          %s1435 = sshll.u32 [#allocation3], 4
          %s1436 = int_to_ptr.vmem [resolvable:$true] %s1435
          %1438 = dma.vmem_to_hbm [thread:$0]  %s1436, 32, %s1433, [#allocation4]
        $region100: #{tpu_custom_call.1} parent=87 // pred_fallthru
          _
        // Predicated region
        $region101: #{tpu_custom_call.1} parent=87 // pred_check
          %p1439 = pneg %p481
        $region102: #{tpu_custom_call.1} parent=87 // pred_check_branch
          %1441 = sbr.rel (%p1439) target = $region104
        $region103: #{tpu_custom_call.1} parent=87 // pred_region
          %1442 = dma.done [#allocation4], 32
        $region104: #{tpu_custom_call.1} parent=87 // pred_fallthru
          _
      $region88: #{tpu_custom_call.1} parent=5 // pred_fallthru
        _
      %p1443 = scmp.le.s32.totalorder 2, %s24
      // Predicated region
      $region105: #{tpu_custom_call.1} parent=5 // pred_check
        %p1444 = pneg %p1443
      $region106: #{tpu_custom_call.1} parent=5 // pred_check_branch
        %1446 = sbr.rel (%p1444) target = $region108
      $region107: #{tpu_custom_call.1} parent=5 // pred_region
        %s1447 = ssub.s32 %s24, 2
      $region108: #{tpu_custom_call.1} parent=5 // pred_fallthru
        _
    $region6: #{tpu_custom_call.1} parent=1 // loop_footer
      %s28 = sadd.s32 1, %s24
    $region7: #{tpu_custom_call.1} parent=1 // loop_footer_branch
      %23 = sbr.rel target = $region3
    $region8: #{tpu_custom_call.1} parent=1 // loop_exit
      _
    %1448 = vsyncpa [#allocation4], 1
    %s1449 = scalar_lea.sflag [#allocation4], 1
    %1450 = vsyncpa %s1449, 1

</llo_original>
